<compile_context>
chip_gen: v7x
topology: tpu7x:2x2x1
jax: 0.10.0
libtpu: 0.0.40
codegen_flags: <defaults>
</compile_context>

<pallas_src>
import numpy as np
import jax
import jax.numpy as jnp
from jax.experimental import pallas as pl
from jax.experimental.pallas import tpu as pltpu

F32 = jnp.float32
BF16 = jnp.bfloat16
EDGE_PAD = 8          # edge_dim (=4) zero-padded up to a sublane multiple


# ------------------------------------------------------------------ kernel ---

def _sigmoid(x):
    # exp and approximate reciprocal both run on the EUP slot -> VALU-free epilogue.
    return pl.reciprocal(1.0 + jnp.exp(-x), approx=True)


def _gine(x_src, x_dst, eproj, G, A, w1, b1, w2, b2, eps):
    """GINEConv: MLP( A @ relu(G @ x_src + eproj) + (1+eps) * x_dst ).

    G/A/w1/w2 are bf16; activations are cast to bf16 only at matmul inputs, while
    accumulation and all elementwise math stay f32 (v5e has no bf16 VPU/EUP)."""
    xj = jnp.dot(G, x_src.astype(BF16), preferred_element_type=F32)      # gather
    msg = jnp.maximum(xj + eproj, 0.0)
    agg = jnp.dot(A, msg.astype(BF16), preferred_element_type=F32)       # scatter-add
    h = agg + (1.0 + eps) * x_dst
    h1 = jnp.maximum(jnp.dot(h.astype(BF16), w1, preferred_element_type=F32) + b1, 0.0)
    return jnp.dot(h1.astype(BF16), w2, preferred_element_type=F32) + b2


def _make_kernel(eps):
    def kernel(xc_in, xa_in, ea_ref, gca_ref, aca_ref, gac_ref, aac_ref,
               wc_ref, bc_ref, wa_ref, ba_ref, we_ref, be_ref,
               w1_ref, b1_ref, w2_ref, b2_ref, bn_ref,
               oc_ref, oa_ref, xc_s, xa_s):
        l = pl.program_id(0)
        last = pl.num_programs(0) - 1

        # Load padded node features into the VMEM-resident activation carry.
        @pl.when(l == 0)
        def _():
            xc_s[...] = xc_in[...]
            xa_s[...] = xa_in[...]

        # Hidden layers only: per-node-type linears (the final GINEConv has none).
        @pl.when(l < last)
        def _():
            xc_s[...] = (jnp.dot(xc_s[...].astype(BF16), wc_ref[...],
                                 preferred_element_type=F32) + bc_ref[...])
            xa_s[...] = (jnp.dot(xa_s[...].astype(BF16), wa_ref[...],
                                 preferred_element_type=F32) + ba_ref[...])

        # Edge projection computed ONCE per layer, shared by both edge directions
        # (T.ToUndirected copies edge_attr; both directions use the same conv).
        eproj = jnp.dot(ea_ref[...], we_ref[...],
                        preferred_element_type=F32) + be_ref[...]
        w1, b1 = w1_ref[...], b1_ref[...]
        w2, b2 = w2_ref[...], b2_ref[...]

        # ('company','interacts','analyst'): analyst features updated first ...
        xa_new = _gine(xc_s[...], xa_s[...], eproj, gca_ref[...], aca_ref[...],
                       w1, b1, w2, b2, eps)
        xa_s[...] = xa_new
        # ... then ('analyst','rev_interacts','company') uses the UPDATED analysts.
        xc_s[...] = _gine(xa_new, xc_s[...], eproj, gac_ref[...], aac_ref[...],
                          w1, b1, w2, b2, eps)

        # Hidden layers only: eval-mode BatchNorm (folded affine) fused with ReLU.
        # TODO(synk): F.dropout(p=0.5) is identity in eval mode (no RNG implemented).
        @pl.when(l < last)
        def _():
            bn = bn_ref[...]                   # (2, H): row 0 scale, row 1 shift
            scale, shift = bn[0:1, :], bn[1:2, :]
            xc_s[...] = jnp.maximum(xc_s[...] * scale + shift, 0.0)
            xa_s[...] = jnp.maximum(xa_s[...] * scale + shift, 0.0)

        # Final layer: sigmoid epilogue, single lane-dense output store.
        @pl.when(l == last)
        def _():
            oc_ref[...] = _sigmoid(xc_s[...])
            oa_ref[...] = _sigmoid(xa_s[...])

    return kernel


# ------------------------------------------------------------ Pallas wrapper

def _cost_estimate(L, Nc, Na, E, H, out_c):
    flops = 0
    for l in range(L):
        o = out_c if l == L - 1 else H
        if l < L - 1:
            flops += 2 * (Nc + Na) * H * H                                   # linears
        flops += 2 * E * EDGE_PAD * H                                        # edge proj
        flops += 2 * E * Nc * H + 2 * Na * E * H + 2 * Na * (H * H + H * o)  # c->a
        flops += 2 * E * Na * H + 2 * Nc * E * H + 2 * Nc * (H * H + H * o)  # a->c
    weight_bytes = L * (2 * (3 * H * H + H * out_c + EDGE_PAD * H)           # bf16 mats
                        + 4 * (5 * H + out_c + 2 * H))                       # f32 b + bn
    io_bytes = (4 * (Nc + Na) * H + 2 * E * EDGE_PAD
                + 2 * 2 * E * (Nc + Na) + 4 * (Nc + Na) * out_c)
    return pl.CostEstimate(flops=int(flops),
                           transcendentals=int((Nc + Na) * out_c),
                           bytes_accessed=int(weight_bytes + io_bytes))


def gnn_forward_pallas(packed, eps, xc_pad, xa_pad, ea_pad, G_ca, A_ca, G_ac, A_ac):
    L, H, _ = packed['Wc'].shape
    out_c = packed['W2'].shape[2]
    Nc, Na, E = xc_pad.shape[0], xa_pad.shape[0], ea_pad.shape[0]

    def resident(shape):            # whole-array block, same block every layer step
        return pl.BlockSpec(shape, lambda l: (0, 0))

    def per_layer(d1, d2):          # one stacked layer slice per grid step
        return pl.BlockSpec((None, d1, d2), lambda l: (l, 0, 0))

    in_specs = [
        resident((Nc, H)), resident((Na, H)), resident((E, EDGE_PAD)),
        resident((E, Nc)), resident((Na, E)), resident((E, Na)), resident((Nc, E)),
        per_layer(H, H), per_layer(1, H),            # company lin
        per_layer(H, H), per_layer(1, H),            # analyst lin
        per_layer(EDGE_PAD, H), per_layer(1, H),     # edge projection
        per_layer(H, H), per_layer(1, H),            # GINE MLP layer 1
        per_layer(H, out_c), per_layer(1, out_c),    # GINE MLP layer 2
        per_layer(2, H),                             # folded BatchNorm
    ]
    out_specs = (resident((Nc, out_c)), resident((Na, out_c)))

    # TODO(synk): at production graph sizes replace the dense one-hot incidence
    # matmuls with a scalar-prefetched index gather/scatter (PrefetchScalarGridSpec)
    # and add a leading 'parallel' node/edge-tile grid axis (needed for v7x: 64 MiB
    # VMEM, 2 TensorCores).  Dense incidence is only appropriate at this toy scale.
    # TODO(synk): batch several graphs to raise matmul M beyond 8-24 rows; single
    # small graphs leave the 256-wide MXU of v6e/v7x mostly idle.
    return pl.pallas_call(
        _make_kernel(float(eps)),
        grid=(L,),
        out_shape=(jax.ShapeDtypeStruct((Nc, out_c), F32),
                   jax.ShapeDtypeStruct((Na, out_c), F32)),
        in_specs=in_specs,
        out_specs=out_specs,
        scratch_shapes=[pltpu.VMEM((Nc, H), F32),    # company activations (carried)
                        pltpu.VMEM((Na, H), F32)],   # analyst activations (carried)
        compiler_params=pltpu.CompilerParams(
            dimension_semantics=("arbitrary",),      # layers are sequential
            vmem_limit_bytes=32 * 1024 * 1024),
        cost_estimate=_cost_estimate(L, Nc, Na, E, H, out_c),
    )(xc_pad, xa_pad, ea_pad, G_ca, A_ca, G_ac, A_ac,
      packed['Wc'], packed['Bc'], packed['Wa'], packed['Ba'],
      packed['We'], packed['Be'], packed['W1'], packed['B1'],
      packed['W2'], packed['B2'], packed['BN'])


# -------------------------------------------------- host-side packing helpers

def pack_inputs(x_c, x_a, edge_attr, G_ca, A_ca, G_ac, A_ac, H):
    """Zero-pad ragged feature dims; bf16 for pure matmul operands (edge/incidence)."""
    def pad_cols(x, c):
        return jnp.pad(x, ((0, 0), (0, c - x.shape[1])))
    return (pad_cols(x_c, H).astype(F32),
            pad_cols(x_a, H).astype(F32),
            pad_cols(edge_attr, EDGE_PAD).astype(BF16),
            G_ca.astype(BF16), A_ca.astype(BF16),
            G_ac.astype(BF16), A_ac.astype(BF16))


def pack_params(params, hidden, out_c, edge_dim):
    """Stack per-layer weights into (L, ...) arrays (bf16 matrices, f32 bias/BN)."""
    H = hidden[0]
    assert all(h == H for h in hidden), "layer-stacked pipeline assumes uniform hidden"
    assert out_c == hidden[-1], \
        "reference module's final GINEConv requires out_channels == hidden[-1]"
    L = len(hidden) + 1
    Wc = np.zeros((L, H, H), np.float32); Bc = np.zeros((L, 1, H), np.float32)
    Wa = np.zeros((L, H, H), np.float32); Ba = np.zeros((L, 1, H), np.float32)
    We = np.zeros((L, EDGE_PAD, H), np.float32); Be = np.zeros((L, 1, H), np.float32)
    W1 = np.zeros((L, H, H), np.float32); B1 = np.zeros((L, 1, H), np.float32)
    W2 = np.zeros((L, H, out_c), np.float32); B2 = np.zeros((L, 1, out_c), np.float32)
    BN = np.zeros((L, 2, H), np.float32)
    for i, lay in enumerate(params['layers']):
        wc = np.asarray(lay['c_lin']['w']); Wc[i, :wc.shape[0], :] = wc
        Bc[i] = np.asarray(lay['c_lin']['b'])
        wa = np.asarray(lay['a_lin']['w']); Wa[i, :wa.shape[0], :] = wa
        Ba[i] = np.asarray(lay['a_lin']['b'])
        conv = lay['conv']
        We[i, :edge_dim, :] = np.asarray(conv['we']); Be[i] = np.asarray(conv['be'])
        W1[i] = np.asarray(conv['w1']); B1[i] = np.asarray(conv['b1'])
        W2[i] = np.asarray(conv['w2']); B2[i] = np.asarray(conv['b2'])
        BN[i] = np.asarray(lay['bn'])
    fc = params['final_conv']
    We[L - 1, :edge_dim, :] = np.asarray(fc['we']); Be[L - 1] = np.asarray(fc['be'])
    W1[L - 1] = np.asarray(fc['w1']); B1[L - 1] = np.asarray(fc['b1'])
    W2[L - 1] = np.asarray(fc['w2']); B2[L - 1] = np.asarray(fc['b2'])
    # Wc/Wa/Bc/Ba/BN entries for the final layer stay zero; never read (pl.when guard).
    return dict(Wc=jnp.asarray(Wc, dtype=BF16), Bc=jnp.asarray(Bc),
                Wa=jnp.asarray(Wa, dtype=BF16), Ba=jnp.asarray(Ba),
                We=jnp.asarray(We, dtype=BF16), Be=jnp.asarray(Be),
                W1=jnp.asarray(W1, dtype=BF16), B1=jnp.asarray(B1),
                W2=jnp.asarray(W2, dtype=BF16), B2=jnp.asarray(B2),
                BN=jnp.asarray(BN))


# --------------------------------------------------------- plain-JAX reference

def gnn_forward_ref(params, eps, x_c, x_a, edge_attr, G_ca, A_ca, G_ac, A_ac,
                    matmul_dtype=jnp.float32):
    """Pure-JAX reference.  matmul_dtype=bf16 mirrors the kernel's operand storage."""
    def mm(a, b):
        return jnp.dot(a.astype(matmul_dtype), b.astype(matmul_dtype),
                       preferred_element_type=F32)

    def gine(x_src, x_dst, eproj, G, A, conv):
        msg = jnp.maximum(mm(G, x_src) + eproj, 0.0)
        h = mm(A, msg) + (1.0 + eps) * x_dst
        h1 = jnp.maximum(mm(h, conv['w1']) + conv['b1'], 0.0)
        return mm(h1, conv['w2']) + conv['b2']

    for lay in params['layers']:
        x_c = mm(x_c, lay['c_lin']['w']) + lay['c_lin']['b']
        x_a = mm(x_a, lay['a_lin']['w']) + lay['a_lin']['b']
        conv = lay['conv']
        eproj = mm(edge_attr, conv['we']) + conv['be']
        x_a = gine(x_c, x_a, eproj, G_ca, A_ca, conv)
        x_c = gine(x_a, x_c, eproj, G_ac, A_ac, conv)
        scale, shift = lay['bn'][0:1, :], lay['bn'][1:2, :]
        x_c = jnp.maximum(x_c * scale + shift, 0.0)
        x_a = jnp.maximum(x_a * scale + shift, 0.0)
    fc = params['final_conv']
    eproj = mm(edge_attr, fc['we']) + fc['be']
    x_a = gine(x_c, x_a, eproj, G_ca, A_ca, fc)
    x_c = gine(x_a, x_c, eproj, G_ac, A_ac, fc)
    return jax.nn.sigmoid(x_c), jax.nn.sigmoid(x_a)


# ------------------------------------------------------------------- params

def init_params(key, in_c, in_a, hidden, out_c, edge_dim=4):
    keys = iter(jax.random.split(key, 512))

    def w(shape):                        # fan-in scaled weights keep activations O(1)
        return (jax.random.normal(next(keys), shape) / np.sqrt(shape[0])).astype(F32)

    def b(shape):
        return (0.1 * jax.random.normal(next(keys), shape)).astype(F32)

    layers = []
    prev_c, prev_a = in_c, in_a
    for h in hidden:
        conv = {'we': w((edge_dim, h)), 'be': b((1, h)),
                'w1': w((h, h)), 'b1': b((1, h)),
                'w2': w((h, h)), 'b2': b((1, h))}
        # eval-mode BatchNorm folded: scale = gamma*rsqrt(var+eps); shift = beta - mean*scale
        gamma = 1.0 + 0.1 * jax.random.normal(next(keys), (1, h))
        beta = 0.1 * jax.random.normal(next(keys), (1, h))
        mean = 0.1 * jax.random.normal(next(keys), (1, h))
        var = 1.0 + jnp.abs(0.1 * jax.random.normal(next(keys), (1, h)))
        scale = gamma * jax.lax.rsqrt(var + 1e-5)
        shift = beta - mean * scale
        bn = jnp.concatenate([scale, shift], axis=0).astype(F32)    # (2, h)
        layers.append({'c_lin': {'w': w((prev_c, h)), 'b': b((1, h))},
                       'a_lin': {'w': w((prev_a, h)), 'b': b((1, h))},
                       'conv': conv, 'bn': bn})
        prev_c = prev_a = h
    h = hidden[-1]
    final_conv = {'we': w((edge_dim, h)), 'be': b((1, h)),
                  'w1': w((h, h)), 'b1': b((1, h)),
                  'w2': w((h, out_c)), 'b2': b((1, out_c))}
    # NOTE: the module's final company_lins/analyst_lins are never used in forward().
    return {'layers': layers, 'final_conv': final_conv}


# --------------------------------------------------------------------- main

if __name__ == "__main__":
    key = jax.random.PRNGKey(0)
    Nc, Na, E = 16, 8, 24             # companies, analysts, edges
    in_c, in_a, edge_dim = 13, 3, 4   # feature dims from generate_dynamic_graph_data
    hidden = [128, 128]
    out_c = 128                       # must equal hidden[-1] (module shape constraint)
    eps = 0.5

    kx, ka, ke, ks, kd, kp = jax.random.split(key, 6)
    x_company = jax.random.normal(kx, (Nc, in_c), F32)
    x_analyst = jax.random.normal(ka, (Na, in_a), F32)
    edge_attr = jax.random.normal(ke, (E, edge_dim), F32)
    src = jax.random.randint(ks, (E,), 0, Nc)     # company index per edge
    dst = jax.random.randint(kd, (E,), 0, Na)     # analyst index per edge

    # Dense incidence matrices: gather = G @ x_src, scatter-add = A @ msg.
    G_ca = jax.nn.one_hot(src, Nc, dtype=F32)     # [E, Nc]
    A_ca = jax.nn.one_hot(dst, Na, dtype=F32).T   # [Na, E]
    G_ac = jax.nn.one_hot(dst, Na, dtype=F32)     # [E, Na]
    A_ac = jax.nn.one_hot(src, Nc, dtype=F32).T   # [Nc, E]
    # T.ToUndirected() copies edge_attr to the reverse relation -> same array reused.

    params = init_params(kp, in_c, in_a, hidden, out_c, edge_dim=edge_dim)
    packed = pack_params(params, hidden, out_c, edge_dim)
    kin = pack_inputs(x_company, x_analyst, edge_attr, G_ca, A_ca, G_ac, A_ac, hidden[0])

    out_cf, out_af = gnn_forward_pallas(packed, eps, *kin)
    jax.block_until_ready((out_cf, out_af))

    # Tight check vs. a reference that mirrors the kernel's bf16 matmul-operand storage.
    ref_c, ref_a = gnn_forward_ref(params, eps, x_company, x_analyst, edge_attr,
                                   G_ca, A_ca, G_ac, A_ac, matmul_dtype=BF16)
    np.testing.assert_allclose(np.asarray(out_cf), np.asarray(ref_c), rtol=5e-3, atol=5e-3)
    np.testing.assert_allclose(np.asarray(out_af), np.asarray(ref_a), rtol=5e-3, atol=5e-3)

    # Loose sanity check vs. full-f32 module semantics (bf16 storage is deliberate).
    ref_c32, ref_a32 = gnn_forward_ref(params, eps, x_company, x_analyst, edge_attr,
                                       G_ca, A_ca, G_ac, A_ac, matmul_dtype=F32)
    np.testing.assert_allclose(np.asarray(out_cf), np.asarray(ref_c32), rtol=1e-1, atol=6e-2)
    np.testing.assert_allclose(np.asarray(out_af), np.asarray(ref_a32), rtol=1e-1, atol=6e-2)

    print("KERNEL_OK")
</pallas_src>

<mosaic_0001>
module attributes {stable_mosaic.version = 11 : i64} {
  func.func @kernel(%arg0: i32, %arg1: memref<16x128xf32, #tpu.memory_space<vmem>>, %arg2: memref<8x128xf32, #tpu.memory_space<vmem>>, %arg3: memref<24x8xbf16, #tpu.memory_space<vmem>>, %arg4: memref<24x16xbf16, #tpu.memory_space<vmem>>, %arg5: memref<8x24xbf16, #tpu.memory_space<vmem>>, %arg6: memref<24x8xbf16, #tpu.memory_space<vmem>>, %arg7: memref<16x24xbf16, #tpu.memory_space<vmem>>, %arg8: memref<1x128x128xbf16, #tpu.memory_space<vmem>>, %arg9: memref<1x1x128xf32, #tpu.memory_space<vmem>>, %arg10: memref<1x128x128xbf16, #tpu.memory_space<vmem>>, %arg11: memref<1x1x128xf32, #tpu.memory_space<vmem>>, %arg12: memref<1x8x128xbf16, #tpu.memory_space<vmem>>, %arg13: memref<1x1x128xf32, #tpu.memory_space<vmem>>, %arg14: memref<1x128x128xbf16, #tpu.memory_space<vmem>>, %arg15: memref<1x1x128xf32, #tpu.memory_space<vmem>>, %arg16: memref<1x128x128xbf16, #tpu.memory_space<vmem>>, %arg17: memref<1x1x128xf32, #tpu.memory_space<vmem>>, %arg18: memref<1x2x128xf32, #tpu.memory_space<vmem>>, %arg19: memref<16x128xf32, #tpu.memory_space<vmem>>, %arg20: memref<8x128xf32, #tpu.memory_space<vmem>>, %arg21: memref<16x128xf32, #tpu.memory_space<vmem>>, %arg22: memref<8x128xf32, #tpu.memory_space<vmem>>) attributes {dimension_semantics = [#tpu.dimension_semantics<arbitrary>], iteration_bounds = array<i64: 3>, scalar_prefetch = 0 : i64, scratch_operands = 2 : i64, tpu.core_type = #tpu.core_type<tc>, window_params = [{pipeline_mode = #tpu.pipeline_mode<synchronous>, transform_indices = @transform_0, window_bounds = array<i64: 16, 128>}, {pipeline_mode = #tpu.pipeline_mode<synchronous>, transform_indices = @transform_1, window_bounds = array<i64: 8, 128>}, {pipeline_mode = #tpu.pipeline_mode<synchronous>, transform_indices = @transform_2, window_bounds = array<i64: 24, 8>}, {pipeline_mode = #tpu.pipeline_mode<synchronous>, transform_indices = @transform_3, window_bounds = array<i64: 24, 16>}, {pipeline_mode = #tpu.pipeline_mode<synchronous>, transform_indices = @transform_4, window_bounds = array<i64: 8, 24>}, {pipeline_mode = #tpu.pipeline_mode<synchronous>, transform_indices = @transform_5, window_bounds = array<i64: 24, 8>}, {pipeline_mode = #tpu.pipeline_mode<synchronous>, transform_indices = @transform_6, window_bounds = array<i64: 16, 24>}, {transform_indices = @transform_7, window_bounds = array<i64: 1, 128, 128>}, {transform_indices = @transform_8, window_bounds = array<i64: 1, 1, 128>}, {transform_indices = @transform_9, window_bounds = array<i64: 1, 128, 128>}, {transform_indices = @transform_10, window_bounds = array<i64: 1, 1, 128>}, {transform_indices = @transform_11, window_bounds = array<i64: 1, 8, 128>}, {transform_indices = @transform_12, window_bounds = array<i64: 1, 1, 128>}, {transform_indices = @transform_13, window_bounds = array<i64: 1, 128, 128>}, {transform_indices = @transform_14, window_bounds = array<i64: 1, 1, 128>}, {transform_indices = @transform_15, window_bounds = array<i64: 1, 128, 128>}, {transform_indices = @transform_16, window_bounds = array<i64: 1, 1, 128>}, {transform_indices = @transform_17, window_bounds = array<i64: 1, 2, 128>}, {pipeline_mode = #tpu.pipeline_mode<synchronous>, transform_indices = @transform_18, window_bounds = array<i64: 16, 128>}, {pipeline_mode = #tpu.pipeline_mode<synchronous>, transform_indices = @transform_19, window_bounds = array<i64: 8, 128>}]} {
    %c0_i32 = arith.constant 0 : i32
    %0 = arith.cmpi eq, %arg0, %c0_i32 : i32
    %1 = arith.extui %0 : i1 to i32
    %c0_i32_0 = arith.constant 0 : i32
    %2 = arith.cmpi ne, %1, %c0_i32_0 : i32
    scf.if %2 {
      %c0_57 = arith.constant 0 : index
      %c0_58 = arith.constant 0 : index
      %77 = vector.load %arg1[%c0_57, %c0_58] : memref<16x128xf32, #tpu.memory_space<vmem>>, vector<16x128xf32>
      %c0_59 = arith.constant 0 : index
      %c0_60 = arith.constant 0 : index
      %78 = vector.load %arg21[%c0_59, %c0_60] : memref<16x128xf32, #tpu.memory_space<vmem>>, vector<16x128xf32>
      tpu.vector_store %arg21[%c0_59, %c0_60], %77 {strides = array<i32>} : memref<16x128xf32, #tpu.memory_space<vmem>>, vector<16x128xf32>,
      %c0_61 = arith.constant 0 : index
      %c0_62 = arith.constant 0 : index
      %79 = vector.load %arg2[%c0_61, %c0_62] : memref<8x128xf32, #tpu.memory_space<vmem>>, vector<8x128xf32>
      %c0_63 = arith.constant 0 : index
      %c0_64 = arith.constant 0 : index
      %80 = vector.load %arg22[%c0_63, %c0_64] : memref<8x128xf32, #tpu.memory_space<vmem>>, vector<8x128xf32>
      tpu.vector_store %arg22[%c0_63, %c0_64], %79 {strides = array<i32>} : memref<8x128xf32, #tpu.memory_space<vmem>>, vector<8x128xf32>,
    } else {
    }
    %c2_i32 = arith.constant 2 : i32
    %3 = arith.cmpi slt, %arg0, %c2_i32 : i32
    %4 = arith.extui %3 : i1 to i32
    %c0_i32_1 = arith.constant 0 : i32
    %5 = arith.cmpi ne, %4, %c0_i32_1 : i32
    scf.if %5 {
      %c0_57 = arith.constant 0 : index
      %c0_58 = arith.constant 0 : index
      %77 = vector.load %arg21[%c0_57, %c0_58] : memref<16x128xf32, #tpu.memory_space<vmem>>, vector<16x128xf32>
      %78 = arith.truncf %77 : vector<16x128xf32> to vector<16x128xbf16>
      %c0_59 = arith.constant 0 : index
      %c0_60 = arith.constant 0 : index
      %c0_61 = arith.constant 0 : index
      %79 = vector.load %arg8[%c0_59, %c0_60, %c0_61] : memref<1x128x128xbf16, #tpu.memory_space<vmem>>, vector<1x128x128xbf16>
      %80 = vector.shape_cast %79 : vector<1x128x128xbf16> to vector<128x128xbf16>
      %cst_62 = arith.constant dense<0.000000e+00> : vector<16x128xf32>
      %81 = tpu.matmul %78, %80, %cst_62 {dimension_numbers = #tpu.dot_dimension_numbers<[1], [0], [0], [1], [0, 0, 1, 1], [], []>} : vector<16x128xbf16>, vector<128x128xbf16>, vector<16x128xf32> -> vector<16x128xf32>
      %c0_63 = arith.constant 0 : index
      %c0_64 = arith.constant 0 : index
      %c0_65 = arith.constant 0 : index
      %82 = vector.load %arg9[%c0_63, %c0_64, %c0_65] : memref<1x1x128xf32, #tpu.memory_space<vmem>>, vector<1x1x128xf32>
      %83 = vector.shape_cast %82 : vector<1x1x128xf32> to vector<1x128xf32>
      %84 = vector.broadcast %83 : vector<1x128xf32> to vector<16x128xf32>
      %85 = arith.addf %81, %84 : vector<16x128xf32>
      %c0_66 = arith.constant 0 : index
      %c0_67 = arith.constant 0 : index
      %86 = vector.load %arg21[%c0_66, %c0_67] : memref<16x128xf32, #tpu.memory_space<vmem>>, vector<16x128xf32>
      tpu.vector_store %arg21[%c0_66, %c0_67], %85 {strides = array<i32>} : memref<16x128xf32, #tpu.memory_space<vmem>>, vector<16x128xf32>,
      %c0_68 = arith.constant 0 : index
      %c0_69 = arith.constant 0 : index
      %87 = vector.load %arg22[%c0_68, %c0_69] : memref<8x128xf32, #tpu.memory_space<vmem>>, vector<8x128xf32>
      %88 = arith.truncf %87 : vector<8x128xf32> to vector<8x128xbf16>
      %c0_70 = arith.constant 0 : index
      %c0_71 = arith.constant 0 : index
      %c0_72 = arith.constant 0 : index
      %89 = vector.load %arg10[%c0_70, %c0_71, %c0_72] : memref<1x128x128xbf16, #tpu.memory_space<vmem>>, vector<1x128x128xbf16>
      %90 = vector.shape_cast %89 : vector<1x128x128xbf16> to vector<128x128xbf16>
      %cst_73 = arith.constant dense<0.000000e+00> : vector<8x128xf32>
      %91 = tpu.matmul %88, %90, %cst_73 {dimension_numbers = #tpu.dot_dimension_numbers<[1], [0], [0], [1], [0, 0, 1, 1], [], []>} : vector<8x128xbf16>, vector<128x128xbf16>, vector<8x128xf32> -> vector<8x128xf32>
      %c0_74 = arith.constant 0 : index
      %c0_75 = arith.constant 0 : index
      %c0_76 = arith.constant 0 : index
      %92 = vector.load %arg11[%c0_74, %c0_75, %c0_76] : memref<1x1x128xf32, #tpu.memory_space<vmem>>, vector<1x1x128xf32>
      %93 = vector.shape_cast %92 : vector<1x1x128xf32> to vector<1x128xf32>
      %94 = vector.broadcast %93 : vector<1x128xf32> to vector<8x128xf32>
      %95 = arith.addf %91, %94 : vector<8x128xf32>
      %c0_77 = arith.constant 0 : index
      %c0_78 = arith.constant 0 : index
      %96 = vector.load %arg22[%c0_77, %c0_78] : memref<8x128xf32, #tpu.memory_space<vmem>>, vector<8x128xf32>
      tpu.vector_store %arg22[%c0_77, %c0_78], %95 {strides = array<i32>} : memref<8x128xf32, #tpu.memory_space<vmem>>, vector<8x128xf32>,
    } else {
    }
    %c0 = arith.constant 0 : index
    %c0_2 = arith.constant 0 : index
    %6 = vector.load %arg3[%c0, %c0_2] : memref<24x8xbf16, #tpu.memory_space<vmem>>, vector<24x8xbf16>
    %c0_3 = arith.constant 0 : index
    %c0_4 = arith.constant 0 : index
    %c0_5 = arith.constant 0 : index
    %7 = vector.load %arg12[%c0_3, %c0_4, %c0_5] : memref<1x8x128xbf16, #tpu.memory_space<vmem>>, vector<1x8x128xbf16>
    %8 = vector.shape_cast %7 : vector<1x8x128xbf16> to vector<8x128xbf16>
    %cst = arith.constant dense<0.000000e+00> : vector<24x128xf32>
    %9 = tpu.matmul %6, %8, %cst {dimension_numbers = #tpu.dot_dimension_numbers<[1], [0], [0], [1], [0, 0, 1, 1], [], []>} : vector<24x8xbf16>, vector<8x128xbf16>, vector<24x128xf32> -> vector<24x128xf32>
    %c0_6 = arith.constant 0 : index
    %c0_7 = arith.constant 0 : index
    %c0_8 = arith.constant 0 : index
    %10 = vector.load %arg13[%c0_6, %c0_7, %c0_8] : memref<1x1x128xf32, #tpu.memory_space<vmem>>, vector<1x1x128xf32>
    %11 = vector.shape_cast %10 : vector<1x1x128xf32> to vector<1x128xf32>
    %12 = vector.broadcast %11 : vector<1x128xf32> to vector<24x128xf32>
    %13 = arith.addf %9, %12 : vector<24x128xf32>
    %c0_9 = arith.constant 0 : index
    %c0_10 = arith.constant 0 : index
    %c0_11 = arith.constant 0 : index
    %14 = vector.load %arg14[%c0_9, %c0_10, %c0_11] : memref<1x128x128xbf16, #tpu.memory_space<vmem>>, vector<1x128x128xbf16>
    %15 = vector.shape_cast %14 : vector<1x128x128xbf16> to vector<128x128xbf16>
    %c0_12 = arith.constant 0 : index
    %c0_13 = arith.constant 0 : index
    %c0_14 = arith.constant 0 : index
    %16 = vector.load %arg15[%c0_12, %c0_13, %c0_14] : memref<1x1x128xf32, #tpu.memory_space<vmem>>, vector<1x1x128xf32>
    %17 = vector.shape_cast %16 : vector<1x1x128xf32> to vector<1x128xf32>
    %c0_15 = arith.constant 0 : index
    %c0_16 = arith.constant 0 : index
    %c0_17 = arith.constant 0 : index
    %18 = vector.load %arg16[%c0_15, %c0_16, %c0_17] : memref<1x128x128xbf16, #tpu.memory_space<vmem>>, vector<1x128x128xbf16>
    %19 = vector.shape_cast %18 : vector<1x128x128xbf16> to vector<128x128xbf16>
    %c0_18 = arith.constant 0 : index
    %c0_19 = arith.constant 0 : index
    %c0_20 = arith.constant 0 : index
    %20 = vector.load %arg17[%c0_18, %c0_19, %c0_20] : memref<1x1x128xf32, #tpu.memory_space<vmem>>, vector<1x1x128xf32>
    %21 = vector.shape_cast %20 : vector<1x1x128xf32> to vector<1x128xf32>
    %c0_21 = arith.constant 0 : index
    %c0_22 = arith.constant 0 : index
    %22 = vector.load %arg21[%c0_21, %c0_22] : memref<16x128xf32, #tpu.memory_space<vmem>>, vector<16x128xf32>
    %c0_23 = arith.constant 0 : index
    %c0_24 = arith.constant 0 : index
    %23 = vector.load %arg22[%c0_23, %c0_24] : memref<8x128xf32, #tpu.memory_space<vmem>>, vector<8x128xf32>
    %c0_25 = arith.constant 0 : index
    %c0_26 = arith.constant 0 : index
    %24 = vector.load %arg4[%c0_25, %c0_26] : memref<24x16xbf16, #tpu.memory_space<vmem>>, vector<24x16xbf16>
    %c0_27 = arith.constant 0 : index
    %c0_28 = arith.constant 0 : index
    %25 = vector.load %arg5[%c0_27, %c0_28] : memref<8x24xbf16, #tpu.memory_space<vmem>>, vector<8x24xbf16>
    %26 = arith.truncf %22 : vector<16x128xf32> to vector<16x128xbf16>
    %cst_29 = arith.constant dense<0.000000e+00> : vector<24x128xf32>
    %27 = tpu.matmul %24, %26, %cst_29 {dimension_numbers = #tpu.dot_dimension_numbers<[1], [0], [0], [1], [0, 0, 1, 1], [], []>} : vector<24x16xbf16>, vector<16x128xbf16>, vector<24x128xf32> -> vector<24x128xf32>
    %28 = arith.addf %27, %13 : vector<24x128xf32>
    %cst_30 = arith.constant 0.000000e+00 : f32
    %29 = vector.broadcast %cst_30 : f32 to vector<24x128xf32>
    %30 = arith.maximumf %28, %29 : vector<24x128xf32>
    %31 = arith.truncf %30 : vector<24x128xf32> to vector<24x128xbf16>
    %cst_31 = arith.constant dense<0.000000e+00> : vector<8x128xf32>
    %32 = tpu.matmul %25, %31, %cst_31 {dimension_numbers = #tpu.dot_dimension_numbers<[1], [0], [0], [1], [0, 0, 1, 1], [], []>} : vector<8x24xbf16>, vector<24x128xbf16>, vector<8x128xf32> -> vector<8x128xf32>
    %cst_32 = arith.constant 1.500000e+00 : f32
    %33 = vector.broadcast %cst_32 : f32 to vector<8x128xf32>
    %34 = arith.mulf %33, %23 : vector<8x128xf32>
    %35 = arith.addf %32, %34 : vector<8x128xf32>
    %36 = arith.truncf %35 : vector<8x128xf32> to vector<8x128xbf16>
    %cst_33 = arith.constant dense<0.000000e+00> : vector<8x128xf32>
    %37 = tpu.matmul %36, %15, %cst_33 {dimension_numbers = #tpu.dot_dimension_numbers<[1], [0], [0], [1], [0, 0, 1, 1], [], []>} : vector<8x128xbf16>, vector<128x128xbf16>, vector<8x128xf32> -> vector<8x128xf32>
    %38 = vector.broadcast %17 : vector<1x128xf32> to vector<8x128xf32>
    %39 = arith.addf %37, %38 : vector<8x128xf32>
    %cst_34 = arith.constant 0.000000e+00 : f32
    %40 = vector.broadcast %cst_34 : f32 to vector<8x128xf32>
    %41 = arith.maximumf %39, %40 : vector<8x128xf32>
    %42 = arith.truncf %41 : vector<8x128xf32> to vector<8x128xbf16>
    %cst_35 = arith.constant dense<0.000000e+00> : vector<8x128xf32>
    %43 = tpu.matmul %42, %19, %cst_35 {dimension_numbers = #tpu.dot_dimension_numbers<[1], [0], [0], [1], [0, 0, 1, 1], [], []>} : vector<8x128xbf16>, vector<128x128xbf16>, vector<8x128xf32> -> vector<8x128xf32>
    %44 = vector.broadcast %21 : vector<1x128xf32> to vector<8x128xf32>
    %45 = arith.addf %43, %44 : vector<8x128xf32>
    %c0_36 = arith.constant 0 : index
    %c0_37 = arith.constant 0 : index
    %46 = vector.load %arg22[%c0_36, %c0_37] : memref<8x128xf32, #tpu.memory_space<vmem>>, vector<8x128xf32>
    tpu.vector_store %arg22[%c0_36, %c0_37], %45 {strides = array<i32>} : memref<8x128xf32, #tpu.memory_space<vmem>>, vector<8x128xf32>,
    %c0_38 = arith.constant 0 : index
    %c0_39 = arith.constant 0 : index
    %47 = vector.load %arg21[%c0_38, %c0_39] : memref<16x128xf32, #tpu.memory_space<vmem>>, vector<16x128xf32>
    %c0_40 = arith.constant 0 : index
    %c0_41 = arith.constant 0 : index
    %48 = vector.load %arg6[%c0_40, %c0_41] : memref<24x8xbf16, #tpu.memory_space<vmem>>, vector<24x8xbf16>
    %c0_42 = arith.constant 0 : index
    %c0_43 = arith.constant 0 : index
    %49 = vector.load %arg7[%c0_42, %c0_43] : memref<16x24xbf16, #tpu.memory_space<vmem>>, vector<16x24xbf16>
    %50 = arith.truncf %45 : vector<8x128xf32> to vector<8x128xbf16>
    %cst_44 = arith.constant dense<0.000000e+00> : vector<24x128xf32>
    %51 = tpu.matmul %48, %50, %cst_44 {dimension_numbers = #tpu.dot_dimension_numbers<[1], [0], [0], [1], [0, 0, 1, 1], [], []>} : vector<24x8xbf16>, vector<8x128xbf16>, vector<24x128xf32> -> vector<24x128xf32>
    %52 = arith.addf %51, %13 : vector<24x128xf32>
    %cst_45 = arith.constant 0.000000e+00 : f32
    %53 = vector.broadcast %cst_45 : f32 to vector<24x128xf32>
    %54 = arith.maximumf %52, %53 : vector<24x128xf32>
    %55 = arith.truncf %54 : vector<24x128xf32> to vector<24x128xbf16>
    %cst_46 = arith.constant dense<0.000000e+00> : vector<16x128xf32>
    %56 = tpu.matmul %49, %55, %cst_46 {dimension_numbers = #tpu.dot_dimension_numbers<[1], [0], [0], [1], [0, 0, 1, 1], [], []>} : vector<16x24xbf16>, vector<24x128xbf16>, vector<16x128xf32> -> vector<16x128xf32>
    %cst_47 = arith.constant 1.500000e+00 : f32
    %57 = vector.broadcast %cst_47 : f32 to vector<16x128xf32>
    %58 = arith.mulf %57, %47 : vector<16x128xf32>
    %59 = arith.addf %56, %58 : vector<16x128xf32>
    %60 = arith.truncf %59 : vector<16x128xf32> to vector<16x128xbf16>
    %cst_48 = arith.constant dense<0.000000e+00> : vector<16x128xf32>
    %61 = tpu.matmul %60, %15, %cst_48 {dimension_numbers = #tpu.dot_dimension_numbers<[1], [0], [0], [1], [0, 0, 1, 1], [], []>} : vector<16x128xbf16>, vector<128x128xbf16>, vector<16x128xf32> -> vector<16x128xf32>
    %62 = vector.broadcast %17 : vector<1x128xf32> to vector<16x128xf32>
    %63 = arith.addf %61, %62 : vector<16x128xf32>
    %cst_49 = arith.constant 0.000000e+00 : f32
    %64 = vector.broadcast %cst_49 : f32 to vector<16x128xf32>
    %65 = arith.maximumf %63, %64 : vector<16x128xf32>
    %66 = arith.truncf %65 : vector<16x128xf32> to vector<16x128xbf16>
    %cst_50 = arith.constant dense<0.000000e+00> : vector<16x128xf32>
    %67 = tpu.matmul %66, %19, %cst_50 {dimension_numbers = #tpu.dot_dimension_numbers<[1], [0], [0], [1], [0, 0, 1, 1], [], []>} : vector<16x128xbf16>, vector<128x128xbf16>, vector<16x128xf32> -> vector<16x128xf32>
    %68 = vector.broadcast %21 : vector<1x128xf32> to vector<16x128xf32>
    %69 = arith.addf %67, %68 : vector<16x128xf32>
    %c0_51 = arith.constant 0 : index
    %c0_52 = arith.constant 0 : index
    %70 = vector.load %arg21[%c0_51, %c0_52] : memref<16x128xf32, #tpu.memory_space<vmem>>, vector<16x128xf32>
    tpu.vector_store %arg21[%c0_51, %c0_52], %69 {strides = array<i32>} : memref<16x128xf32, #tpu.memory_space<vmem>>, vector<16x128xf32>,
    %c2_i32_53 = arith.constant 2 : i32
    %71 = arith.cmpi slt, %arg0, %c2_i32_53 : i32
    %72 = arith.extui %71 : i1 to i32
    %c0_i32_54 = arith.constant 0 : i32
    %73 = arith.cmpi ne, %72, %c0_i32_54 : i32
    scf.if %73 {
      %c0_57 = arith.constant 0 : index
      %c0_58 = arith.constant 0 : index
      %c0_59 = arith.constant 0 : index
      %77 = vector.load %arg18[%c0_57, %c0_58, %c0_59] : memref<1x2x128xf32, #tpu.memory_space<vmem>>, vector<1x2x128xf32>
      %78 = vector.shape_cast %77 : vector<1x2x128xf32> to vector<2x128xf32>
      %79 = vector.extract_strided_slice %78 {offsets = [0, 0], sizes = [1, 128], strides = [1, 1]} : vector<2x128xf32> to vector<1x128xf32>
      %80 = vector.extract_strided_slice %78 {offsets = [1, 0], sizes = [1, 128], strides = [1, 1]} : vector<2x128xf32> to vector<1x128xf32>
      %c0_60 = arith.constant 0 : index
      %c0_61 = arith.constant 0 : index
      %81 = vector.load %arg21[%c0_60, %c0_61] : memref<16x128xf32, #tpu.memory_space<vmem>>, vector<16x128xf32>
      %82 = vector.broadcast %79 : vector<1x128xf32> to vector<16x128xf32>
      %83 = arith.mulf %81, %82 : vector<16x128xf32>
      %84 = vector.broadcast %80 : vector<1x128xf32> to vector<16x128xf32>
      %85 = arith.addf %83, %84 : vector<16x128xf32>
      %cst_62 = arith.constant 0.000000e+00 : f32
      %86 = vector.broadcast %cst_62 : f32 to vector<16x128xf32>
      %87 = arith.maximumf %85, %86 : vector<16x128xf32>
      %c0_63 = arith.constant 0 : index
      %c0_64 = arith.constant 0 : index
      %88 = vector.load %arg21[%c0_63, %c0_64] : memref<16x128xf32, #tpu.memory_space<vmem>>, vector<16x128xf32>
      tpu.vector_store %arg21[%c0_63, %c0_64], %87 {strides = array<i32>} : memref<16x128xf32, #tpu.memory_space<vmem>>, vector<16x128xf32>,
      %c0_65 = arith.constant 0 : index
      %c0_66 = arith.constant 0 : index
      %89 = vector.load %arg22[%c0_65, %c0_66] : memref<8x128xf32, #tpu.memory_space<vmem>>, vector<8x128xf32>
      %90 = vector.broadcast %79 : vector<1x128xf32> to vector<8x128xf32>
      %91 = arith.mulf %89, %90 : vector<8x128xf32>
      %92 = vector.broadcast %80 : vector<1x128xf32> to vector<8x128xf32>
      %93 = arith.addf %91, %92 : vector<8x128xf32>
      %cst_67 = arith.constant 0.000000e+00 : f32
      %94 = vector.broadcast %cst_67 : f32 to vector<8x128xf32>
      %95 = arith.maximumf %93, %94 : vector<8x128xf32>
      %c0_68 = arith.constant 0 : index
      %c0_69 = arith.constant 0 : index
      %96 = vector.load %arg22[%c0_68, %c0_69] : memref<8x128xf32, #tpu.memory_space<vmem>>, vector<8x128xf32>
      tpu.vector_store %arg22[%c0_68, %c0_69], %95 {strides = array<i32>} : memref<8x128xf32, #tpu.memory_space<vmem>>, vector<8x128xf32>,
    } else {
    }
    %c2_i32_55 = arith.constant 2 : i32
    %74 = arith.cmpi eq, %arg0, %c2_i32_55 : i32
    %75 = arith.extui %74 : i1 to i32
    %c0_i32_56 = arith.constant 0 : i32
    %76 = arith.cmpi ne, %75, %c0_i32_56 : i32
    scf.if %76 {
      %c0_57 = arith.constant 0 : index
      %c0_58 = arith.constant 0 : index
      %77 = vector.load %arg21[%c0_57, %c0_58] : memref<16x128xf32, #tpu.memory_space<vmem>>, vector<16x128xf32>
      %cst_59 = arith.constant 0.000000e+00 : f32
      %78 = vector.broadcast %cst_59 : f32 to vector<16x128xf32>
      %79 = arith.subf %78, %77 : vector<16x128xf32>
      %80 = math.exp %79 : vector<16x128xf32>
      %cst_60 = arith.constant 1.000000e+00 : f32
      %81 = vector.broadcast %cst_60 : f32 to vector<16x128xf32>
      %82 = arith.addf %81, %80 : vector<16x128xf32>
      %83 = tpu.reciprocal %82 {approx = true} : vector<16x128xf32> -> vector<16x128xf32>
      %c0_61 = arith.constant 0 : index
      %c0_62 = arith.constant 0 : index
      %84 = vector.load %arg19[%c0_61, %c0_62] : memref<16x128xf32, #tpu.memory_space<vmem>>, vector<16x128xf32>
      tpu.vector_store %arg19[%c0_61, %c0_62], %83 {strides = array<i32>} : memref<16x128xf32, #tpu.memory_space<vmem>>, vector<16x128xf32>,
      %c0_63 = arith.constant 0 : index
      %c0_64 = arith.constant 0 : index
      %85 = vector.load %arg22[%c0_63, %c0_64] : memref<8x128xf32, #tpu.memory_space<vmem>>, vector<8x128xf32>
      %cst_65 = arith.constant 0.000000e+00 : f32
      %86 = vector.broadcast %cst_65 : f32 to vector<8x128xf32>
      %87 = arith.subf %86, %85 : vector<8x128xf32>
      %88 = math.exp %87 : vector<8x128xf32>
      %cst_66 = arith.constant 1.000000e+00 : f32
      %89 = vector.broadcast %cst_66 : f32 to vector<8x128xf32>
      %90 = arith.addf %89, %88 : vector<8x128xf32>
      %91 = tpu.reciprocal %90 {approx = true} : vector<8x128xf32> -> vector<8x128xf32>
      %c0_67 = arith.constant 0 : index
      %c0_68 = arith.constant 0 : index
      %92 = vector.load %arg20[%c0_67, %c0_68] : memref<8x128xf32, #tpu.memory_space<vmem>>, vector<8x128xf32>
      tpu.vector_store %arg20[%c0_67, %c0_68], %91 {strides = array<i32>} : memref<8x128xf32, #tpu.memory_space<vmem>>, vector<8x128xf32>,
    } else {
    }
    return
  }
  func.func @transform_0(%arg0: i32) -> (i32, i32) {
    %c0_i32 = arith.constant 0 : i32
    %c0_i32_0 = arith.constant 0 : i32
    %c0_i32_1 = arith.constant 0 : i32
    return %c0_i32, %c0_i32_0 : i32, i32
  }
  func.func @transform_1(%arg0: i32) -> (i32, i32) {
    %c0_i32 = arith.constant 0 : i32
    %c0_i32_0 = arith.constant 0 : i32
    %c0_i32_1 = arith.constant 0 : i32
    return %c0_i32, %c0_i32_0 : i32, i32
  }
  func.func @transform_2(%arg0: i32) -> (i32, i32) {
    %c0_i32 = arith.constant 0 : i32
    %c0_i32_0 = arith.constant 0 : i32
    %c0_i32_1 = arith.constant 0 : i32
    return %c0_i32, %c0_i32_0 : i32, i32
  }
  func.func @transform_3(%arg0: i32) -> (i32, i32) {
    %c0_i32 = arith.constant 0 : i32
    %c0_i32_0 = arith.constant 0 : i32
    %c0_i32_1 = arith.constant 0 : i32
    return %c0_i32, %c0_i32_0 : i32, i32
  }
  func.func @transform_4(%arg0: i32) -> (i32, i32) {
    %c0_i32 = arith.constant 0 : i32
    %c0_i32_0 = arith.constant 0 : i32
    %c0_i32_1 = arith.constant 0 : i32
    return %c0_i32, %c0_i32_0 : i32, i32
  }
  func.func @transform_5(%arg0: i32) -> (i32, i32) {
    %c0_i32 = arith.constant 0 : i32
    %c0_i32_0 = arith.constant 0 : i32
    %c0_i32_1 = arith.constant 0 : i32
    return %c0_i32, %c0_i32_0 : i32, i32
  }
  func.func @transform_6(%arg0: i32) -> (i32, i32) {
    %c0_i32 = arith.constant 0 : i32
    %c0_i32_0 = arith.constant 0 : i32
    %c0_i32_1 = arith.constant 0 : i32
    return %c0_i32, %c0_i32_0 : i32, i32
  }
  func.func @transform_7(%arg0: i32) -> (i32, i32, i32) {
    %c0_i32 = arith.constant 0 : i32
    %c0_i32_0 = arith.constant 0 : i32
    %c0_i32_1 = arith.constant 0 : i32
    return %arg0, %c0_i32, %c0_i32_0 : i32, i32, i32
  }
  func.func @transform_8(%arg0: i32) -> (i32, i32, i32) {
    %c0_i32 = arith.constant 0 : i32
    %c0_i32_0 = arith.constant 0 : i32
    %c0_i32_1 = arith.constant 0 : i32
    return %arg0, %c0_i32, %c0_i32_0 : i32, i32, i32
  }
  func.func @transform_9(%arg0: i32) -> (i32, i32, i32) {
    %c0_i32 = arith.constant 0 : i32
    %c0_i32_0 = arith.constant 0 : i32
    %c0_i32_1 = arith.constant 0 : i32
    return %arg0, %c0_i32, %c0_i32_0 : i32, i32, i32
  }
  func.func @transform_10(%arg0: i32) -> (i32, i32, i32) {
    %c0_i32 = arith.constant 0 : i32
    %c0_i32_0 = arith.constant 0 : i32
    %c0_i32_1 = arith.constant 0 : i32
    return %arg0, %c0_i32, %c0_i32_0 : i32, i32, i32
  }
  func.func @transform_11(%arg0: i32) -> (i32, i32, i32) {
    %c0_i32 = arith.constant 0 : i32
    %c0_i32_0 = arith.constant 0 : i32
    %c0_i32_1 = arith.constant 0 : i32
    return %arg0, %c0_i32, %c0_i32_0 : i32, i32, i32
  }
  func.func @transform_12(%arg0: i32) -> (i32, i32, i32) {
    %c0_i32 = arith.constant 0 : i32
    %c0_i32_0 = arith.constant 0 : i32
    %c0_i32_1 = arith.constant 0 : i32
    return %arg0, %c0_i32, %c0_i32_0 : i32, i32, i32
  }
  func.func @transform_13(%arg0: i32) -> (i32, i32, i32) {
    %c0_i32 = arith.constant 0 : i32
    %c0_i32_0 = arith.constant 0 : i32
    %c0_i32_1 = arith.constant 0 : i32
    return %arg0, %c0_i32, %c0_i32_0 : i32, i32, i32
  }
  func.func @transform_14(%arg0: i32) -> (i32, i32, i32) {
    %c0_i32 = arith.constant 0 : i32
    %c0_i32_0 = arith.constant 0 : i32
    %c0_i32_1 = arith.constant 0 : i32
    return %arg0, %c0_i32, %c0_i32_0 : i32, i32, i32
  }
  func.func @transform_15(%arg0: i32) -> (i32, i32, i32) {
    %c0_i32 = arith.constant 0 : i32
    %c0_i32_0 = arith.constant 0 : i32
    %c0_i32_1 = arith.constant 0 : i32
    return %arg0, %c0_i32, %c0_i32_0 : i32, i32, i32
  }
  func.func @transform_16(%arg0: i32) -> (i32, i32, i32) {
    %c0_i32 = arith.constant 0 : i32
    %c0_i32_0 = arith.constant 0 : i32
    %c0_i32_1 = arith.constant 0 : i32
    return %arg0, %c0_i32, %c0_i32_0 : i32, i32, i32
  }
  func.func @transform_17(%arg0: i32) -> (i32, i32, i32) {
    %c0_i32 = arith.constant 0 : i32
    %c0_i32_0 = arith.constant 0 : i32
    %c0_i32_1 = arith.constant 0 : i32
    return %arg0, %c0_i32, %c0_i32_0 : i32, i32, i32
  }
  func.func @transform_18(%arg0: i32) -> (i32, i32) {
    %c0_i32 = arith.constant 0 : i32
    %c0_i32_0 = arith.constant 0 : i32
    %c0_i32_1 = arith.constant 0 : i32
    return %c0_i32, %c0_i32_0 : i32, i32
  }
  func.func @transform_19(%arg0: i32) -> (i32, i32) {
    %c0_i32 = arith.constant 0 : i32
    %c0_i32_0 = arith.constant 0 : i32
    %c0_i32_1 = arith.constant 0 : i32
    return %c0_i32, %c0_i32_0 : i32, i32
  }
}

</mosaic_0001>

<llo_original>
// kernel: tpu_custom_call.1
$region0: #{tpu_custom_call.1}
  #allocation0 [shape = 'u32[]', space=smem, size = 0x4, offset = 0x4, fixed_abs, tag = 'smem constant byte address 0x4 - core index']
  #allocation1 [shape = 'u32[144,128]{1,0:T(1,128)}', space=vmem, size = 0x12000, scoped, tag = 'internal scratch']
  #allocation2 [shape = 'f32[16,128]{1,0:T(8,128)}', space=vmem, size = 0x2000, scoped, tag = 'scratch operand']
  #allocation3 [shape = 'f32[8,128]{1,0:T(8,128)}', space=vmem, size = 0x1000, scoped, tag = 'scratch operand']
  %s0 = inlined_call_operand.vmem [shape: f32[16,128], index: 0, kind: input, shape index: {}]
  %s1 = inlined_call_operand.vmem [shape: f32[8,128], index: 1, kind: input, shape index: {}]
  %s2 = inlined_call_operand.vmem [shape: bf16[24,8], index: 2, kind: input, shape index: {}]
  %s3 = inlined_call_operand.vmem [shape: bf16[24,16], index: 3, kind: input, shape index: {}]
  %s4 = inlined_call_operand.vmem [shape: bf16[8,24], index: 4, kind: input, shape index: {}]
  %s5 = inlined_call_operand.vmem [shape: bf16[24,8], index: 5, kind: input, shape index: {}]
  %s6 = inlined_call_operand.vmem [shape: bf16[16,24], index: 6, kind: input, shape index: {}]
  %s7 = inlined_call_operand.hbm [shape: bf16[3,128,128], index: 7, kind: input, shape index: {}]
  %s8 = inlined_call_operand.vmem [shape: f32[3,1,128], index: 8, kind: input, shape index: {}]
  %s9 = inlined_call_operand.hbm [shape: bf16[3,128,128], index: 9, kind: input, shape index: {}]
  %s10 = inlined_call_operand.vmem [shape: f32[3,1,128], index: 10, kind: input, shape index: {}]
  %s11 = inlined_call_operand.vmem [shape: bf16[3,8,128], index: 11, kind: input, shape index: {}]
  %s12 = inlined_call_operand.vmem [shape: f32[3,1,128], index: 12, kind: input, shape index: {}]
  %s13 = inlined_call_operand.hbm [shape: bf16[3,128,128], index: 13, kind: input, shape index: {}]
  %s14 = inlined_call_operand.vmem [shape: f32[3,1,128], index: 14, kind: input, shape index: {}]
  %s15 = inlined_call_operand.hbm [shape: bf16[3,128,128], index: 15, kind: input, shape index: {}]
  %s16 = inlined_call_operand.vmem [shape: f32[3,1,128], index: 16, kind: input, shape index: {}]
  %s17 = inlined_call_operand.vmem [shape: f32[3,2,128], index: 17, kind: input, shape index: {}]
  %s18 = inlined_call_operand.hbm [shape: f32[16,128], index: 18, kind: output, shape index: {0}]
  %s19 = inlined_call_operand.hbm [shape: f32[8,128], index: 19, kind: output, shape index: {1}]
  %20 = xla_tuple %s18, %s19
  %s21 = sld [smem:[#allocation0]]
  $region145: #{tpu_custom_call.1} parent=0
    _
  %s23 = ssub.s32 1, %s21
  %s24 = scalar_select 0, %s23, %s21
  $region1: #{tpu_custom_call.1} parent=0
    #allocation4 [shape = 'u8[65536]{0}', space=vmem, size = 0x10000, scoped, tag = 'input window, operand 7']
    #allocation5 [shape = 's32[2]{0}', space=sflag, size = 0x8, scoped, tag = 'scoped memory for tpu_custom_call.1']
    #allocation6 [shape = 's32[2]{0}', space=sflag, size = 0x8, scoped, tag = 'scoped memory for tpu_custom_call.1']
    #allocation7 [shape = 'u8[65536]{0}', space=vmem, size = 0x10000, scoped, tag = 'input window, operand 9']
    #allocation8 [shape = 's32[2]{0}', space=sflag, size = 0x8, scoped, tag = 'scoped memory for tpu_custom_call.1']
    #allocation9 [shape = 'u8[65536]{0}', space=vmem, size = 0x10000, scoped, tag = 'input window, operand 13']
    #allocation10 [shape = 'u8[65536]{0}', space=vmem, size = 0x10000, scoped, tag = 'input window, operand 15']
    #allocation11 [shape = 's32[2]{0}', space=sflag, size = 0x8, scoped, tag = 'scoped memory for tpu_custom_call.1']
    #allocation12 [shape = 'u8[8192]{0}', space=vmem, size = 0x2000, scoped, tag = 'output window, operand 0, single buffered']
    #allocation13 [shape = 'u8[4096]{0}', space=vmem, size = 0x1000, scoped, tag = 'output window, operand 1, single buffered']
    #allocation14 [shape = 's32[1]{0}', space=sflag, size = 0x4, scoped, tag = 'scoped memory for tpu_custom_call.1']
    %25 = vsyncpa [#allocation5], 0
    %s26 = scalar_lea.sflag [#allocation5], 1
    %27 = vsyncpa %s26, 0
    %28 = vsyncpa [#allocation8], 0
    %s29 = scalar_lea.sflag [#allocation8], 1
    %30 = vsyncpa %s29, 0
    %31 = vsyncpa [#allocation11], 0
    %s32 = scalar_lea.sflag [#allocation11], 1
    %33 = vsyncpa %s32, 0
    %34 = vsyncpa [#allocation6], 0
    %35 = vsyncpa [#allocation14], 0
    loop: start=0, step=1, limit=5
    $region2: #{tpu_custom_call.1} parent=1 // loop_pre_header
      _
    $region3: #{tpu_custom_call.1} parent=1 // loop_header
      %s37 = sphi 0, %s41
      %p38 = scmp.ge.s32.totalorder %s37, 5
      %s45 = sphi 0, %s45
      %s47 = sphi 0, %s45
      %s48 = sphi 0, %s47
      %s62 = sphi 0, %s48
      %s66 = sphi 0, %s66
      %s68 = sphi 0, %s66
      %s69 = sphi 0, %s68
      %s83 = sphi 0, %s69
      %s87 = sphi 0, %s87
      %s89 = sphi 0, %s87
      %s90 = sphi 0, %s89
      %s104 = sphi 0, %s90
      %s108 = sphi 0, %s108
      %s110 = sphi 0, %s108
      %s111 = sphi 0, %s110
      %s125 = sphi 0, %s111
      %s129 = sphi 0, %s129
      %s131 = sphi 0, %s129
      %s132 = sphi 0, %s131
      %s146 = sphi 0, %s132
      %s150 = sphi 0, %s150
      %s152 = sphi 0, %s150
      %s153 = sphi 0, %s152
      %s167 = sphi 0, %s153
      %s171 = sphi 0, %s171
      %s173 = sphi 0, %s171
      %s174 = sphi 0, %s173
      %s188 = sphi 0, %s174
      %s194 = sphi 0, %s196
      %s197 = sphi 0, %s194
      %s198 = sphi 0, %s197
      %s214 = sphi 0, %s198
      %s220 = sphi 0, %s222
      %s223 = sphi 0, %s220
      %s224 = sphi 0, %s223
      %s240 = sphi 0, %s224
      %s246 = sphi 0, %s248
      %s249 = sphi 0, %s246
      %s250 = sphi 0, %s249
      %s266 = sphi 0, %s250
      %s272 = sphi 0, %s274
      %s275 = sphi 0, %s272
      %s276 = sphi 0, %s275
      %s292 = sphi 0, %s276
      %s298 = sphi 0, %s300
      %s301 = sphi 0, %s298
      %s302 = sphi 0, %s301
      %s318 = sphi 0, %s302
      %s324 = sphi 0, %s326
      %s327 = sphi 0, %s324
      %s328 = sphi 0, %s327
      %s344 = sphi 0, %s328
      %s350 = sphi 0, %s352
      %s353 = sphi 0, %s350
      %s354 = sphi 0, %s353
      %s370 = sphi 0, %s354
      %s376 = sphi 0, %s378
      %s379 = sphi 0, %s376
      %s380 = sphi 0, %s379
      %s396 = sphi 0, %s380
      %s402 = sphi 0, %s404
      %s405 = sphi 0, %s402
      %s406 = sphi 0, %s405
      %s422 = sphi 0, %s406
      %s428 = sphi 0, %s430
      %s431 = sphi 0, %s428
      %s432 = sphi 0, %s431
      %s448 = sphi 0, %s432
      %s454 = sphi 0, %s456
      %s457 = sphi 0, %s454
      %s458 = sphi 0, %s457
      %s474 = sphi 0, %s458
      %s478 = sphi 0, %s478
      %s480 = sphi 0, %s478
      %s481 = sphi 0, %s480
      %s495 = sphi 0, %s481
      %s499 = sphi 0, %s499
      %s501 = sphi 0, %s499
      %s502 = sphi 0, %s501
      %s516 = sphi 0, %s502
    $region4: #{tpu_custom_call.1} parent=1 // loop_header_branch
      %40 = sbr.rel (%p38) target = $region8
    $region5: #{tpu_custom_call.1} parent=1 // loop_body
      %s42 = ssub.s32 %s37, 1
      %s43 = ssub.s32 %s37, 2
      %s44 = sadd.s32 %s37, 1
      %s46 = sadd.s32 %s45, 1
      %p49 = scmp.eq.s32.totalorder %s37, 2
      %p50 = scmp.ne.s32.totalorder %s45, %s47
      %p51 = scmp.eq.s32.totalorder %s37, 0
      %p52 = por %p50, %p51
      %p53 = scmp.ne.s32.totalorder %s45, %s47
      %p54 = scmp.eq.s32.totalorder %s42, 2
      %p55 = por %p53, %p54
      %p56 = scmp.ne.s32.totalorder %s47, %s48
      %p57 = scmp.eq.s32.totalorder %s42, 0
      %p58 = por %p56, %p57
      %p59 = scmp.ne.s32.totalorder %s47, %s48
      %p60 = scmp.eq.s32.totalorder %s43, 2
      %p61 = por %p59, %p60
      %p63 = scmp.ne.s32.totalorder %s48, %s62
      %p64 = scmp.eq.s32.totalorder %s43, 0
      %p65 = por %p63, %p64
      %s67 = sadd.s32 %s66, 1
      %p70 = scmp.eq.s32.totalorder %s37, 2
      %p71 = scmp.ne.s32.totalorder %s66, %s68
      %p72 = scmp.eq.s32.totalorder %s37, 0
      %p73 = por %p71, %p72
      %p74 = scmp.ne.s32.totalorder %s66, %s68
      %p75 = scmp.eq.s32.totalorder %s42, 2
      %p76 = por %p74, %p75
      %p77 = scmp.ne.s32.totalorder %s68, %s69
      %p78 = scmp.eq.s32.totalorder %s42, 0
      %p79 = por %p77, %p78
      %p80 = scmp.ne.s32.totalorder %s68, %s69
      %p81 = scmp.eq.s32.totalorder %s43, 2
      %p82 = por %p80, %p81
      %p84 = scmp.ne.s32.totalorder %s69, %s83
      %p85 = scmp.eq.s32.totalorder %s43, 0
      %p86 = por %p84, %p85
      %s88 = sadd.s32 %s87, 1
      %p91 = scmp.eq.s32.totalorder %s37, 2
      %p92 = scmp.ne.s32.totalorder %s87, %s89
      %p93 = scmp.eq.s32.totalorder %s37, 0
      %p94 = por %p92, %p93
      %p95 = scmp.ne.s32.totalorder %s87, %s89
      %p96 = scmp.eq.s32.totalorder %s42, 2
      %p97 = por %p95, %p96
      %p98 = scmp.ne.s32.totalorder %s89, %s90
      %p99 = scmp.eq.s32.totalorder %s42, 0
      %p100 = por %p98, %p99
      %p101 = scmp.ne.s32.totalorder %s89, %s90
      %p102 = scmp.eq.s32.totalorder %s43, 2
      %p103 = por %p101, %p102
      %p105 = scmp.ne.s32.totalorder %s90, %s104
      %p106 = scmp.eq.s32.totalorder %s43, 0
      %p107 = por %p105, %p106
      %s109 = sadd.s32 %s108, 1
      %p112 = scmp.eq.s32.totalorder %s37, 2
      %p113 = scmp.ne.s32.totalorder %s108, %s110
      %p114 = scmp.eq.s32.totalorder %s37, 0
      %p115 = por %p113, %p114
      %p116 = scmp.ne.s32.totalorder %s108, %s110
      %p117 = scmp.eq.s32.totalorder %s42, 2
      %p118 = por %p116, %p117
      %p119 = scmp.ne.s32.totalorder %s110, %s111
      %p120 = scmp.eq.s32.totalorder %s42, 0
      %p121 = por %p119, %p120
      %p122 = scmp.ne.s32.totalorder %s110, %s111
      %p123 = scmp.eq.s32.totalorder %s43, 2
      %p124 = por %p122, %p123
      %p126 = scmp.ne.s32.totalorder %s111, %s125
      %p127 = scmp.eq.s32.totalorder %s43, 0
      %p128 = por %p126, %p127
      %s130 = sadd.s32 %s129, 1
      %p133 = scmp.eq.s32.totalorder %s37, 2
      %p134 = scmp.ne.s32.totalorder %s129, %s131
      %p135 = scmp.eq.s32.totalorder %s37, 0
      %p136 = por %p134, %p135
      %p137 = scmp.ne.s32.totalorder %s129, %s131
      %p138 = scmp.eq.s32.totalorder %s42, 2
      %p139 = por %p137, %p138
      %p140 = scmp.ne.s32.totalorder %s131, %s132
      %p141 = scmp.eq.s32.totalorder %s42, 0
      %p142 = por %p140, %p141
      %p143 = scmp.ne.s32.totalorder %s131, %s132
      %p144 = scmp.eq.s32.totalorder %s43, 2
      %p145 = por %p143, %p144
      %p147 = scmp.ne.s32.totalorder %s132, %s146
      %p148 = scmp.eq.s32.totalorder %s43, 0
      %p149 = por %p147, %p148
      %s151 = sadd.s32 %s150, 1
      %p154 = scmp.eq.s32.totalorder %s37, 2
      %p155 = scmp.ne.s32.totalorder %s150, %s152
      %p156 = scmp.eq.s32.totalorder %s37, 0
      %p157 = por %p155, %p156
      %p158 = scmp.ne.s32.totalorder %s150, %s152
      %p159 = scmp.eq.s32.totalorder %s42, 2
      %p160 = por %p158, %p159
      %p161 = scmp.ne.s32.totalorder %s152, %s153
      %p162 = scmp.eq.s32.totalorder %s42, 0
      %p163 = por %p161, %p162
      %p164 = scmp.ne.s32.totalorder %s152, %s153
      %p165 = scmp.eq.s32.totalorder %s43, 2
      %p166 = por %p164, %p165
      %p168 = scmp.ne.s32.totalorder %s153, %s167
      %p169 = scmp.eq.s32.totalorder %s43, 0
      %p170 = por %p168, %p169
      %s172 = sadd.s32 %s171, 1
      %p175 = scmp.eq.s32.totalorder %s37, 2
      %p176 = scmp.ne.s32.totalorder %s171, %s173
      %p177 = scmp.eq.s32.totalorder %s37, 0
      %p178 = por %p176, %p177
      %p179 = scmp.ne.s32.totalorder %s171, %s173
      %p180 = scmp.eq.s32.totalorder %s42, 2
      %p181 = por %p179, %p180
      %p182 = scmp.ne.s32.totalorder %s173, %s174
      %p183 = scmp.eq.s32.totalorder %s42, 0
      %p184 = por %p182, %p183
      %p185 = scmp.ne.s32.totalorder %s173, %s174
      %p186 = scmp.eq.s32.totalorder %s43, 2
      %p187 = por %p185, %p186
      %p189 = scmp.ne.s32.totalorder %s174, %s188
      %p190 = scmp.eq.s32.totalorder %s43, 0
      %p191 = por %p189, %p190
      %s192 = ssub.s32 %s37, %s44
      %p193 = scmp.eq.s32.totalorder %s192, 0
      %s195 = sadd.s32 %s194, 1
      %s196 = scalar_select %p193, %s194, %s195
      %p199 = pneg %p193
      %p200 = scmp.eq.s32.totalorder %s37, 2
      %p201 = por %p199, %p200
      %p202 = scmp.ne.s32.totalorder %s194, %s197
      %p203 = scmp.eq.s32.totalorder %s37, 0
      %p204 = por %p202, %p203
      %p205 = scmp.ne.s32.totalorder %s194, %s197
      %p206 = scmp.eq.s32.totalorder %s42, 2
      %p207 = por %p205, %p206
      %p208 = scmp.ne.s32.totalorder %s197, %s198
      %p209 = scmp.eq.s32.totalorder %s42, 0
      %p210 = por %p208, %p209
      %p211 = scmp.ne.s32.totalorder %s197, %s198
      %p212 = scmp.eq.s32.totalorder %s43, 2
      %p213 = por %p211, %p212
      %p215 = scmp.ne.s32.totalorder %s198, %s214
      %p216 = scmp.eq.s32.totalorder %s43, 0
      %p217 = por %p215, %p216
      %s218 = ssub.s32 %s37, %s44
      %p219 = scmp.eq.s32.totalorder %s218, 0
      %s221 = sadd.s32 %s220, 1
      %s222 = scalar_select %p219, %s220, %s221
      %p225 = pneg %p219
      %p226 = scmp.eq.s32.totalorder %s37, 2
      %p227 = por %p225, %p226
      %p228 = scmp.ne.s32.totalorder %s220, %s223
      %p229 = scmp.eq.s32.totalorder %s37, 0
      %p230 = por %p228, %p229
      %p231 = scmp.ne.s32.totalorder %s220, %s223
      %p232 = scmp.eq.s32.totalorder %s42, 2
      %p233 = por %p231, %p232
      %p234 = scmp.ne.s32.totalorder %s223, %s224
      %p235 = scmp.eq.s32.totalorder %s42, 0
      %p236 = por %p234, %p235
      %p237 = scmp.ne.s32.totalorder %s223, %s224
      %p238 = scmp.eq.s32.totalorder %s43, 2
      %p239 = por %p237, %p238
      %p241 = scmp.ne.s32.totalorder %s224, %s240
      %p242 = scmp.eq.s32.totalorder %s43, 0
      %p243 = por %p241, %p242
      %s244 = ssub.s32 %s37, %s44
      %p245 = scmp.eq.s32.totalorder %s244, 0
      %s247 = sadd.s32 %s246, 1
      %s248 = scalar_select %p245, %s246, %s247
      %p251 = pneg %p245
      %p252 = scmp.eq.s32.totalorder %s37, 2
      %p253 = por %p251, %p252
      %p254 = scmp.ne.s32.totalorder %s246, %s249
      %p255 = scmp.eq.s32.totalorder %s37, 0
      %p256 = por %p254, %p255
      %p257 = scmp.ne.s32.totalorder %s246, %s249
      %p258 = scmp.eq.s32.totalorder %s42, 2
      %p259 = por %p257, %p258
      %p260 = scmp.ne.s32.totalorder %s249, %s250
      %p261 = scmp.eq.s32.totalorder %s42, 0
      %p262 = por %p260, %p261
      %p263 = scmp.ne.s32.totalorder %s249, %s250
      %p264 = scmp.eq.s32.totalorder %s43, 2
      %p265 = por %p263, %p264
      %p267 = scmp.ne.s32.totalorder %s250, %s266
      %p268 = scmp.eq.s32.totalorder %s43, 0
      %p269 = por %p267, %p268
      %s270 = ssub.s32 %s37, %s44
      %p271 = scmp.eq.s32.totalorder %s270, 0
      %s273 = sadd.s32 %s272, 1
      %s274 = scalar_select %p271, %s272, %s273
      %p277 = pneg %p271
      %p278 = scmp.eq.s32.totalorder %s37, 2
      %p279 = por %p277, %p278
      %p280 = scmp.ne.s32.totalorder %s272, %s275
      %p281 = scmp.eq.s32.totalorder %s37, 0
      %p282 = por %p280, %p281
      %p283 = scmp.ne.s32.totalorder %s272, %s275
      %p284 = scmp.eq.s32.totalorder %s42, 2
      %p285 = por %p283, %p284
      %p286 = scmp.ne.s32.totalorder %s275, %s276
      %p287 = scmp.eq.s32.totalorder %s42, 0
      %p288 = por %p286, %p287
      %p289 = scmp.ne.s32.totalorder %s275, %s276
      %p290 = scmp.eq.s32.totalorder %s43, 2
      %p291 = por %p289, %p290
      %p293 = scmp.ne.s32.totalorder %s276, %s292
      %p294 = scmp.eq.s32.totalorder %s43, 0
      %p295 = por %p293, %p294
      %s296 = ssub.s32 %s37, %s44
      %p297 = scmp.eq.s32.totalorder %s296, 0
      %s299 = sadd.s32 %s298, 1
      %s300 = scalar_select %p297, %s298, %s299
      %p303 = pneg %p297
      %p304 = scmp.eq.s32.totalorder %s37, 2
      %p305 = por %p303, %p304
      %p306 = scmp.ne.s32.totalorder %s298, %s301
      %p307 = scmp.eq.s32.totalorder %s37, 0
      %p308 = por %p306, %p307
      %p309 = scmp.ne.s32.totalorder %s298, %s301
      %p310 = scmp.eq.s32.totalorder %s42, 2
      %p311 = por %p309, %p310
      %p312 = scmp.ne.s32.totalorder %s301, %s302
      %p313 = scmp.eq.s32.totalorder %s42, 0
      %p314 = por %p312, %p313
      %p315 = scmp.ne.s32.totalorder %s301, %s302
      %p316 = scmp.eq.s32.totalorder %s43, 2
      %p317 = por %p315, %p316
      %p319 = scmp.ne.s32.totalorder %s302, %s318
      %p320 = scmp.eq.s32.totalorder %s43, 0
      %p321 = por %p319, %p320
      %s322 = ssub.s32 %s37, %s44
      %p323 = scmp.eq.s32.totalorder %s322, 0
      %s325 = sadd.s32 %s324, 1
      %s326 = scalar_select %p323, %s324, %s325
      %p329 = pneg %p323
      %p330 = scmp.eq.s32.totalorder %s37, 2
      %p331 = por %p329, %p330
      %p332 = scmp.ne.s32.totalorder %s324, %s327
      %p333 = scmp.eq.s32.totalorder %s37, 0
      %p334 = por %p332, %p333
      %p335 = scmp.ne.s32.totalorder %s324, %s327
      %p336 = scmp.eq.s32.totalorder %s42, 2
      %p337 = por %p335, %p336
      %p338 = scmp.ne.s32.totalorder %s327, %s328
      %p339 = scmp.eq.s32.totalorder %s42, 0
      %p340 = por %p338, %p339
      %p341 = scmp.ne.s32.totalorder %s327, %s328
      %p342 = scmp.eq.s32.totalorder %s43, 2
      %p343 = por %p341, %p342
      %p345 = scmp.ne.s32.totalorder %s328, %s344
      %p346 = scmp.eq.s32.totalorder %s43, 0
      %p347 = por %p345, %p346
      %s348 = ssub.s32 %s37, %s44
      %p349 = scmp.eq.s32.totalorder %s348, 0
      %s351 = sadd.s32 %s350, 1
      %s352 = scalar_select %p349, %s350, %s351
      %p355 = pneg %p349
      %p356 = scmp.eq.s32.totalorder %s37, 2
      %p357 = por %p355, %p356
      %p358 = scmp.ne.s32.totalorder %s350, %s353
      %p359 = scmp.eq.s32.totalorder %s37, 0
      %p360 = por %p358, %p359
      %p361 = scmp.ne.s32.totalorder %s350, %s353
      %p362 = scmp.eq.s32.totalorder %s42, 2
      %p363 = por %p361, %p362
      %p364 = scmp.ne.s32.totalorder %s353, %s354
      %p365 = scmp.eq.s32.totalorder %s42, 0
      %p366 = por %p364, %p365
      %p367 = scmp.ne.s32.totalorder %s353, %s354
      %p368 = scmp.eq.s32.totalorder %s43, 2
      %p369 = por %p367, %p368
      %p371 = scmp.ne.s32.totalorder %s354, %s370
      %p372 = scmp.eq.s32.totalorder %s43, 0
      %p373 = por %p371, %p372
      %s374 = ssub.s32 %s37, %s44
      %p375 = scmp.eq.s32.totalorder %s374, 0
      %s377 = sadd.s32 %s376, 1
      %s378 = scalar_select %p375, %s376, %s377
      %p381 = pneg %p375
      %p382 = scmp.eq.s32.totalorder %s37, 2
      %p383 = por %p381, %p382
      %p384 = scmp.ne.s32.totalorder %s376, %s379
      %p385 = scmp.eq.s32.totalorder %s37, 0
      %p386 = por %p384, %p385
      %p387 = scmp.ne.s32.totalorder %s376, %s379
      %p388 = scmp.eq.s32.totalorder %s42, 2
      %p389 = por %p387, %p388
      %p390 = scmp.ne.s32.totalorder %s379, %s380
      %p391 = scmp.eq.s32.totalorder %s42, 0
      %p392 = por %p390, %p391
      %p393 = scmp.ne.s32.totalorder %s379, %s380
      %p394 = scmp.eq.s32.totalorder %s43, 2
      %p395 = por %p393, %p394
      %p397 = scmp.ne.s32.totalorder %s380, %s396
      %p398 = scmp.eq.s32.totalorder %s43, 0
      %p399 = por %p397, %p398
      %s400 = ssub.s32 %s37, %s44
      %p401 = scmp.eq.s32.totalorder %s400, 0
      %s403 = sadd.s32 %s402, 1
      %s404 = scalar_select %p401, %s402, %s403
      %p407 = pneg %p401
      %p408 = scmp.eq.s32.totalorder %s37, 2
      %p409 = por %p407, %p408
      %p410 = scmp.ne.s32.totalorder %s402, %s405
      %p411 = scmp.eq.s32.totalorder %s37, 0
      %p412 = por %p410, %p411
      %p413 = scmp.ne.s32.totalorder %s402, %s405
      %p414 = scmp.eq.s32.totalorder %s42, 2
      %p415 = por %p413, %p414
      %p416 = scmp.ne.s32.totalorder %s405, %s406
      %p417 = scmp.eq.s32.totalorder %s42, 0
      %p418 = por %p416, %p417
      %p419 = scmp.ne.s32.totalorder %s405, %s406
      %p420 = scmp.eq.s32.totalorder %s43, 2
      %p421 = por %p419, %p420
      %p423 = scmp.ne.s32.totalorder %s406, %s422
      %p424 = scmp.eq.s32.totalorder %s43, 0
      %p425 = por %p423, %p424
      %s426 = ssub.s32 %s37, %s44
      %p427 = scmp.eq.s32.totalorder %s426, 0
      %s429 = sadd.s32 %s428, 1
      %s430 = scalar_select %p427, %s428, %s429
      %p433 = pneg %p427
      %p434 = scmp.eq.s32.totalorder %s37, 2
      %p435 = por %p433, %p434
      %p436 = scmp.ne.s32.totalorder %s428, %s431
      %p437 = scmp.eq.s32.totalorder %s37, 0
      %p438 = por %p436, %p437
      %p439 = scmp.ne.s32.totalorder %s428, %s431
      %p440 = scmp.eq.s32.totalorder %s42, 2
      %p441 = por %p439, %p440
      %p442 = scmp.ne.s32.totalorder %s431, %s432
      %p443 = scmp.eq.s32.totalorder %s42, 0
      %p444 = por %p442, %p443
      %p445 = scmp.ne.s32.totalorder %s431, %s432
      %p446 = scmp.eq.s32.totalorder %s43, 2
      %p447 = por %p445, %p446
      %p449 = scmp.ne.s32.totalorder %s432, %s448
      %p450 = scmp.eq.s32.totalorder %s43, 0
      %p451 = por %p449, %p450
      %s452 = ssub.s32 %s37, %s44
      %p453 = scmp.eq.s32.totalorder %s452, 0
      %s455 = sadd.s32 %s454, 1
      %s456 = scalar_select %p453, %s454, %s455
      %p459 = pneg %p453
      %p460 = scmp.eq.s32.totalorder %s37, 2
      %p461 = por %p459, %p460
      %p462 = scmp.ne.s32.totalorder %s454, %s457
      %p463 = scmp.eq.s32.totalorder %s37, 0
      %p464 = por %p462, %p463
      %p465 = scmp.ne.s32.totalorder %s454, %s457
      %p466 = scmp.eq.s32.totalorder %s42, 2
      %p467 = por %p465, %p466
      %p468 = scmp.ne.s32.totalorder %s457, %s458
      %p469 = scmp.eq.s32.totalorder %s42, 0
      %p470 = por %p468, %p469
      %p471 = scmp.ne.s32.totalorder %s457, %s458
      %p472 = scmp.eq.s32.totalorder %s43, 2
      %p473 = por %p471, %p472
      %p475 = scmp.ne.s32.totalorder %s458, %s474
      %p476 = scmp.eq.s32.totalorder %s43, 0
      %p477 = por %p475, %p476
      %s479 = sadd.s32 %s478, 1
      %p482 = scmp.eq.s32.totalorder %s37, 2
      %p483 = scmp.ne.s32.totalorder %s478, %s480
      %p484 = scmp.eq.s32.totalorder %s37, 0
      %p485 = por %p483, %p484
      %p486 = scmp.ne.s32.totalorder %s478, %s480
      %p487 = scmp.eq.s32.totalorder %s42, 2
      %p488 = por %p486, %p487
      %p489 = scmp.ne.s32.totalorder %s480, %s481
      %p490 = scmp.eq.s32.totalorder %s42, 0
      %p491 = por %p489, %p490
      %p492 = scmp.ne.s32.totalorder %s480, %s481
      %p493 = scmp.eq.s32.totalorder %s43, 2
      %p494 = por %p492, %p493
      %p496 = scmp.ne.s32.totalorder %s481, %s495
      %p497 = scmp.eq.s32.totalorder %s43, 0
      %p498 = por %p496, %p497
      %s500 = sadd.s32 %s499, 1
      %p503 = scmp.eq.s32.totalorder %s37, 2
      %p504 = scmp.ne.s32.totalorder %s499, %s501
      %p505 = scmp.eq.s32.totalorder %s37, 0
      %p506 = por %p504, %p505
      %p507 = scmp.ne.s32.totalorder %s499, %s501
      %p508 = scmp.eq.s32.totalorder %s42, 2
      %p509 = por %p507, %p508
      %p510 = scmp.ne.s32.totalorder %s501, %s502
      %p511 = scmp.eq.s32.totalorder %s42, 0
      %p512 = por %p510, %p511
      %p513 = scmp.ne.s32.totalorder %s501, %s502
      %p514 = scmp.eq.s32.totalorder %s43, 2
      %p515 = por %p513, %p514
      %p517 = scmp.ne.s32.totalorder %s502, %s516
      %p518 = scmp.eq.s32.totalorder %s43, 0
      %p519 = por %p517, %p518
      %p520 = scmp.le.s32.totalorder 1, %s37
      %p521 = scmp.lt.s32.totalorder %s37, 4
      %p522 = pnand %p520, %p521
      %p523 = pneg %p522
      // Predicated region
      $region9: #{tpu_custom_call.1} parent=5 // pred_check
        _
      $region10: #{tpu_custom_call.1} parent=5 // pred_check_branch
        %525 = sbr.rel (%p522) target = $region12
      $region11: #{tpu_custom_call.1} parent=5 // pred_region
        %s526 = ssub.s32 %s37, 1
        // Predicated region
        $region13: #{tpu_custom_call.1} parent=11 // pred_check
          %p527 = pneg %p58
        $region14: #{tpu_custom_call.1} parent=11 // pred_check_branch
          %529 = sbr.rel (%p527) target = $region16
        $region15: #{tpu_custom_call.1} parent=11 // pred_region
          _
        $region16: #{tpu_custom_call.1} parent=11 // pred_fallthru
          _
        // Predicated region
        $region17: #{tpu_custom_call.1} parent=11 // pred_check
          %p530 = pneg %p79
        $region18: #{tpu_custom_call.1} parent=11 // pred_check_branch
          %532 = sbr.rel (%p530) target = $region20
        $region19: #{tpu_custom_call.1} parent=11 // pred_region
          _
        $region20: #{tpu_custom_call.1} parent=11 // pred_fallthru
          _
        // Predicated region
        $region21: #{tpu_custom_call.1} parent=11 // pred_check
          %p533 = pneg %p100
        $region22: #{tpu_custom_call.1} parent=11 // pred_check_branch
          %535 = sbr.rel (%p533) target = $region24
        $region23: #{tpu_custom_call.1} parent=11 // pred_region
          _
        $region24: #{tpu_custom_call.1} parent=11 // pred_fallthru
          _
        // Predicated region
        $region25: #{tpu_custom_call.1} parent=11 // pred_check
          %p536 = pneg %p121
        $region26: #{tpu_custom_call.1} parent=11 // pred_check_branch
          %538 = sbr.rel (%p536) target = $region28
        $region27: #{tpu_custom_call.1} parent=11 // pred_region
          _
        $region28: #{tpu_custom_call.1} parent=11 // pred_fallthru
          _
        // Predicated region
        $region29: #{tpu_custom_call.1} parent=11 // pred_check
          %p539 = pneg %p142
        $region30: #{tpu_custom_call.1} parent=11 // pred_check_branch
          %541 = sbr.rel (%p539) target = $region32
        $region31: #{tpu_custom_call.1} parent=11 // pred_region
          _
        $region32: #{tpu_custom_call.1} parent=11 // pred_fallthru
          _
        // Predicated region
        $region33: #{tpu_custom_call.1} parent=11 // pred_check
          %p542 = pneg %p163
        $region34: #{tpu_custom_call.1} parent=11 // pred_check_branch
          %544 = sbr.rel (%p542) target = $region36
        $region35: #{tpu_custom_call.1} parent=11 // pred_region
          _
        $region36: #{tpu_custom_call.1} parent=11 // pred_fallthru
          _
        // Predicated region
        $region37: #{tpu_custom_call.1} parent=11 // pred_check
          %p545 = pneg %p184
        $region38: #{tpu_custom_call.1} parent=11 // pred_check_branch
          %547 = sbr.rel (%p545) target = $region40
        $region39: #{tpu_custom_call.1} parent=11 // pred_region
          _
        $region40: #{tpu_custom_call.1} parent=11 // pred_fallthru
          _
      $region12: #{tpu_custom_call.1} parent=5 // pred_fallthru
        _
      %p548 = scmp.lt.s32.totalorder %s37, 3
      // Predicated region
      $region41: #{tpu_custom_call.1} parent=5 // pred_check
        %p549 = pneg %p548
      $region42: #{tpu_custom_call.1} parent=5 // pred_check_branch
        %551 = sbr.rel (%p549) target = $region44
      $region43: #{tpu_custom_call.1} parent=5 // pred_region
        // Predicated region
        $region45: #{tpu_custom_call.1} parent=43 // pred_check
          %p552 = pneg %p204
        $region46: #{tpu_custom_call.1} parent=43 // pred_check_branch
          %554 = sbr.rel (%p552) target = $region48
        $region47: #{tpu_custom_call.1} parent=43 // pred_region
          %s555 = sand.u32 %s194, 1
          %s556 = scalar_lea.sflag [#allocation5], %s555
          %s557 = sand.u32 %s194, 1
          %s558 = smul.addr %s557, 64
          %s559 = scalar_lea.vmem [#allocation4], %s558
          %s561 = ssub.s32 1024, 1024
          %562 = vsyncadd %s556, %s561
          %s563 = smul.addr %s37, 16
          %s564 = smul.addr %s563, 64
          %s565 = scalar_lea.hbm %s7, %s564
          %s566 = sshll.u32 %s559, 4
          %s567 = int_to_ptr.vmem [resolvable:$true] %s566
          %572 = dma.hbm_to_vmem [thread:$0]  %s565, 1024, %s567, %s556, 64, 64, 4
        $region48: #{tpu_custom_call.1} parent=43 // pred_fallthru
          _
        // Predicated region
        $region49: #{tpu_custom_call.1} parent=43 // pred_check
          %p573 = pneg %p230
        $region50: #{tpu_custom_call.1} parent=43 // pred_check_branch
          %575 = sbr.rel (%p573) target = $region52
        $region51: #{tpu_custom_call.1} parent=43 // pred_region
          %p576 = scmp.lt.s32.totalorder %s37, 2
          %s577 = scalar_select %p576, %s37, 2
          %s578 = scalar_lea.vmem %s8, %s577
        $region52: #{tpu_custom_call.1} parent=43 // pred_fallthru
          _
        // Predicated region
        $region53: #{tpu_custom_call.1} parent=43 // pred_check
          %p579 = pneg %p256
        $region54: #{tpu_custom_call.1} parent=43 // pred_check_branch
          %581 = sbr.rel (%p579) target = $region56
        $region55: #{tpu_custom_call.1} parent=43 // pred_region
          %s582 = sand.u32 %s37, 1
          %s583 = scalar_lea.sflag [#allocation8], %s582
          %s584 = sand.u32 %s246, 1
          %s585 = smul.addr %s584, 64
          %s586 = scalar_lea.vmem [#allocation7], %s585
          %s588 = ssub.s32 1024, 1024
          %589 = vsyncadd %s583, %s588
          %s590 = smul.addr %s37, 16
          %s591 = smul.addr %s590, 64
          %s592 = scalar_lea.hbm %s9, %s591
          %s593 = sshll.u32 %s586, 4
          %s594 = int_to_ptr.vmem [resolvable:$true] %s593
          %599 = dma.hbm_to_vmem [thread:$0]  %s592, 1024, %s594, %s583, 64, 64, 4
        $region56: #{tpu_custom_call.1} parent=43 // pred_fallthru
          _
        // Predicated region
        $region57: #{tpu_custom_call.1} parent=43 // pred_check
          %p600 = pneg %p282
        $region58: #{tpu_custom_call.1} parent=43 // pred_check_branch
          %602 = sbr.rel (%p600) target = $region60
        $region59: #{tpu_custom_call.1} parent=43 // pred_region
          %p603 = scmp.lt.s32.totalorder %s37, 2
          %s604 = scalar_select %p603, %s37, 2
          %s605 = scalar_lea.vmem %s10, %s604
        $region60: #{tpu_custom_call.1} parent=43 // pred_fallthru
          _
        // Predicated region
        $region61: #{tpu_custom_call.1} parent=43 // pred_check
          %p606 = pneg %p308
        $region62: #{tpu_custom_call.1} parent=43 // pred_check_branch
          %608 = sbr.rel (%p606) target = $region64
        $region63: #{tpu_custom_call.1} parent=43 // pred_region
          %p609 = scmp.lt.s32.totalorder %s37, 2
          %s610 = scalar_select %p609, %s37, 2
          %s611 = smul.addr %s610, 4
          %s612 = scalar_lea.vmem %s11, %s611
        $region64: #{tpu_custom_call.1} parent=43 // pred_fallthru
          _
        // Predicated region
        $region65: #{tpu_custom_call.1} parent=43 // pred_check
          %p613 = pneg %p334
        $region66: #{tpu_custom_call.1} parent=43 // pred_check_branch
          %615 = sbr.rel (%p613) target = $region68
        $region67: #{tpu_custom_call.1} parent=43 // pred_region
          %p616 = scmp.lt.s32.totalorder %s37, 2
          %s617 = scalar_select %p616, %s37, 2
          %s618 = scalar_lea.vmem %s12, %s617
        $region68: #{tpu_custom_call.1} parent=43 // pred_fallthru
          _
        // Predicated region
        $region69: #{tpu_custom_call.1} parent=43 // pred_check
          %p619 = pneg %p360
        $region70: #{tpu_custom_call.1} parent=43 // pred_check_branch
          %621 = sbr.rel (%p619) target = $region72
        $region71: #{tpu_custom_call.1} parent=43 // pred_region
          %s622 = sand.u32 %s37, 1
          %s623 = scalar_lea.sflag [#allocation8], %s622
          %s624 = sand.u32 %s350, 1
          %s625 = smul.addr %s624, 64
          %s626 = scalar_lea.vmem [#allocation9], %s625
          %s628 = ssub.s32 1024, 1024
          %629 = vsyncadd %s623, %s628
          %s630 = smul.addr %s37, 16
          %s631 = smul.addr %s630, 64
          %s632 = scalar_lea.hbm %s13, %s631
          %s633 = sshll.u32 %s626, 4
          %s634 = int_to_ptr.vmem [resolvable:$true] %s633
          %639 = dma.hbm_to_vmem [thread:$0]  %s632, 1024, %s634, %s623, 64, 64, 4
        $region72: #{tpu_custom_call.1} parent=43 // pred_fallthru
          _
        // Predicated region
        $region73: #{tpu_custom_call.1} parent=43 // pred_check
          %p640 = pneg %p386
        $region74: #{tpu_custom_call.1} parent=43 // pred_check_branch
          %642 = sbr.rel (%p640) target = $region76
        $region75: #{tpu_custom_call.1} parent=43 // pred_region
          %p643 = scmp.lt.s32.totalorder %s37, 2
          %s644 = scalar_select %p643, %s37, 2
          %s645 = scalar_lea.vmem %s14, %s644
        $region76: #{tpu_custom_call.1} parent=43 // pred_fallthru
          _
        // Predicated region
        $region77: #{tpu_custom_call.1} parent=43 // pred_check
          %p646 = pneg %p412
        $region78: #{tpu_custom_call.1} parent=43 // pred_check_branch
          %648 = sbr.rel (%p646) target = $region80
        $region79: #{tpu_custom_call.1} parent=43 // pred_region
          %s649 = sand.u32 %s402, 1
          %s650 = scalar_lea.sflag [#allocation11], %s649
          %s651 = sand.u32 %s402, 1
          %s652 = smul.addr %s651, 64
          %s653 = scalar_lea.vmem [#allocation10], %s652
          %s655 = ssub.s32 1024, 1024
          %656 = vsyncadd %s650, %s655
          %s657 = smul.addr %s37, 16
          %s658 = smul.addr %s657, 64
          %s659 = scalar_lea.hbm %s15, %s658
          %s660 = sshll.u32 %s653, 4
          %s661 = int_to_ptr.vmem [resolvable:$true] %s660
          %666 = dma.hbm_to_vmem [thread:$0]  %s659, 1024, %s661, %s650, 64, 64, 4
        $region80: #{tpu_custom_call.1} parent=43 // pred_fallthru
          _
        // Predicated region
        $region81: #{tpu_custom_call.1} parent=43 // pred_check
          %p667 = pneg %p438
        $region82: #{tpu_custom_call.1} parent=43 // pred_check_branch
          %669 = sbr.rel (%p667) target = $region84
        $region83: #{tpu_custom_call.1} parent=43 // pred_region
          %p670 = scmp.lt.s32.totalorder %s37, 2
          %s671 = scalar_select %p670, %s37, 2
          %s672 = scalar_lea.vmem %s16, %s671
        $region84: #{tpu_custom_call.1} parent=43 // pred_fallthru
          _
        // Predicated region
        $region85: #{tpu_custom_call.1} parent=43 // pred_check
          %p673 = pneg %p464
        $region86: #{tpu_custom_call.1} parent=43 // pred_check_branch
          %675 = sbr.rel (%p673) target = $region88
        $region87: #{tpu_custom_call.1} parent=43 // pred_region
          %p676 = scmp.lt.s32.totalorder %s37, 2
          %s677 = scalar_select %p676, %s37, 2
          %s678 = smul.addr %s677, 2
          %s679 = scalar_lea.vmem %s17, %s678
        $region88: #{tpu_custom_call.1} parent=43 // pred_fallthru
          _
      $region44: #{tpu_custom_call.1} parent=5 // pred_fallthru
        _
      %p680 = scmp.le.s32.totalorder 1, %s37
      %p681 = scmp.lt.s32.totalorder %s37, 4
      %p682 = pnand %p680, %p681
      %p683 = pneg %p682
      // Predicated region
      $region89: #{tpu_custom_call.1} parent=5 // pred_check
        _
      $region90: #{tpu_custom_call.1} parent=5 // pred_check_branch
        %685 = sbr.rel (%p682) target = $region92
      $region91: #{tpu_custom_call.1} parent=5 // pred_region
        %s686 = ssub.s32 %s37, 1
        %s687 = sand.u32 %s197, 1
        %s688 = scalar_lea.sflag [#allocation5], %s687
        %s689 = sand.u32 %s197, 1
        %s690 = smul.addr %s689, 64
        %s691 = scalar_lea.vmem [#allocation4], %s690
        // Predicated region
        $region93: #{tpu_custom_call.1} parent=91 // pred_check
          %p692 = pneg %p210
        $region94: #{tpu_custom_call.1} parent=91 // pred_check_branch
          %694 = sbr.rel (%p692) target = $region96
        $region95: #{tpu_custom_call.1} parent=91 // pred_region
          %695 = dma.done %s688, 1024
        $region96: #{tpu_custom_call.1} parent=91 // pred_fallthru
          _
        %s696 = sand.u32 %s42, 1
        %s697 = scalar_lea.sflag [#allocation8], %s696
        %s698 = sand.u32 %s249, 1
        %s699 = smul.addr %s698, 64
        %s700 = scalar_lea.vmem [#allocation7], %s699
        // Predicated region
        $region97: #{tpu_custom_call.1} parent=91 // pred_check
          %p701 = pneg %p262
        $region98: #{tpu_custom_call.1} parent=91 // pred_check_branch
          %703 = sbr.rel (%p701) target = $region100
        $region99: #{tpu_custom_call.1} parent=91 // pred_region
          %704 = dma.done %s697, 1024
        $region100: #{tpu_custom_call.1} parent=91 // pred_fallthru
          _
        %s705 = sand.u32 %s42, 1
        %s706 = scalar_lea.sflag [#allocation8], %s705
        %s707 = sand.u32 %s353, 1
        %s708 = smul.addr %s707, 64
        %s709 = scalar_lea.vmem [#allocation9], %s708
        // Predicated region
        $region101: #{tpu_custom_call.1} parent=91 // pred_check
          %p710 = pneg %p366
        $region102: #{tpu_custom_call.1} parent=91 // pred_check_branch
          %712 = sbr.rel (%p710) target = $region104
        $region103: #{tpu_custom_call.1} parent=91 // pred_region
          %713 = dma.done %s706, 1024
        $region104: #{tpu_custom_call.1} parent=91 // pred_fallthru
          _
        %s714 = sand.u32 %s405, 1
        %s715 = scalar_lea.sflag [#allocation11], %s714
        %s716 = sand.u32 %s405, 1
        %s717 = smul.addr %s716, 64
        %s718 = scalar_lea.vmem [#allocation10], %s717
        // Predicated region
        $region105: #{tpu_custom_call.1} parent=91 // pred_check
          %p719 = pneg %p418
        $region106: #{tpu_custom_call.1} parent=91 // pred_check_branch
          %721 = sbr.rel (%p719) target = $region108
        $region107: #{tpu_custom_call.1} parent=91 // pred_region
          %722 = dma.done %s715, 1024
        $region108: #{tpu_custom_call.1} parent=91 // pred_fallthru
          _
        %p723 = pneg %p58
        %p724 = pneg %p55
        %p725 = pneg %p79
        %p726 = pneg %p76
        %p727 = pneg %p100
        %p728 = pneg %p97
        %p729 = pneg %p121
        %p730 = pneg %p118
        %p731 = pneg %p142
        %p732 = pneg %p139
        %p733 = pneg %p163
        %p734 = pneg %p160
        %p735 = pneg %p184
        %p736 = pneg %p181
        %s737 = sand.u32 %s197, 1
        %s738 = scalar_lea.sflag [#allocation5], %s737
        %s739 = sand.u32 %s197, 1
        %s740 = smul.addr %s739, 64
        %s741 = scalar_lea.vmem [#allocation4], %s740
        %p742 = pneg %p210
        %p743 = pneg %p207
        %p744 = scmp.lt.s32.totalorder %s42, 2
        %s745 = scalar_select %p744, %s42, 2
        %s746 = scalar_lea.vmem %s8, %s745
        %p747 = pneg %p236
        %p748 = pneg %p233
        %s749 = sand.u32 %s42, 1
        %s750 = scalar_lea.sflag [#allocation8], %s749
        %s751 = sand.u32 %s249, 1
        %s752 = smul.addr %s751, 64
        %s753 = scalar_lea.vmem [#allocation7], %s752
        %p754 = pneg %p262
        %p755 = pneg %p259
        %p756 = scmp.lt.s32.totalorder %s42, 2
        %s757 = scalar_select %p756, %s42, 2
        %s758 = scalar_lea.vmem %s10, %s757
        %p759 = pneg %p288
        %p760 = pneg %p285
        %p761 = scmp.lt.s32.totalorder %s42, 2
        %s762 = scalar_select %p761, %s42, 2
        %s763 = smul.addr %s762, 4
        %s764 = scalar_lea.vmem %s11, %s763
        %p765 = pneg %p314
        %p766 = pneg %p311
        %p767 = scmp.lt.s32.totalorder %s42, 2
        %s768 = scalar_select %p767, %s42, 2
        %s769 = scalar_lea.vmem %s12, %s768
        %p770 = pneg %p340
        %p771 = pneg %p337
        %s772 = sand.u32 %s42, 1
        %s773 = scalar_lea.sflag [#allocation8], %s772
        %s774 = sand.u32 %s353, 1
        %s775 = smul.addr %s774, 64
        %s776 = scalar_lea.vmem [#allocation9], %s775
        %p777 = pneg %p366
        %p778 = pneg %p363
        %p779 = scmp.lt.s32.totalorder %s42, 2
        %s780 = scalar_select %p779, %s42, 2
        %s781 = scalar_lea.vmem %s14, %s780
        %p782 = pneg %p392
        %p783 = pneg %p389
        %s784 = sand.u32 %s405, 1
        %s785 = scalar_lea.sflag [#allocation11], %s784
        %s786 = sand.u32 %s405, 1
        %s787 = smul.addr %s786, 64
        %s788 = scalar_lea.vmem [#allocation10], %s787
        %p789 = pneg %p418
        %p790 = pneg %p415
        %p791 = scmp.lt.s32.totalorder %s42, 2
        %s792 = scalar_select %p791, %s42, 2
        %s793 = scalar_lea.vmem %s16, %s792
        %p794 = pneg %p444
        %p795 = pneg %p441
        %p796 = scmp.lt.s32.totalorder %s42, 2
        %s797 = scalar_select %p796, %s42, 2
        %s798 = smul.addr %s797, 2
        %s799 = scalar_lea.vmem %s17, %s798
        %p800 = pneg %p470
        %p801 = pneg %p467
        %p802 = pneg %p491
        %p803 = pneg %p488
        %p804 = pneg %p512
        %p805 = pneg %p509
        %p806 = scmp.lt.s32.totalorder %s42, 2
        %s807 = scalar_select %p806, %s42, 2
        %s808 = scalar_lea.vmem %s8, %s807
        %p809 = scmp.lt.s32.totalorder %s42, 2
        %s810 = scalar_select %p809, %s42, 2
        %s811 = scalar_lea.vmem %s10, %s810
        %p812 = scmp.lt.s32.totalorder %s42, 2
        %s813 = scalar_select %p812, %s42, 2
        %s814 = smul.addr %s813, 4
        %s815 = scalar_lea.vmem %s11, %s814
        %p816 = scmp.lt.s32.totalorder %s42, 2
        %s817 = scalar_select %p816, %s42, 2
        %s818 = scalar_lea.vmem %s12, %s817
        %p819 = scmp.lt.s32.totalorder %s42, 2
        %s820 = scalar_select %p819, %s42, 2
        %s821 = scalar_lea.vmem %s14, %s820
        %p822 = scmp.lt.s32.totalorder %s42, 2
        %s823 = scalar_select %p822, %s42, 2
        %s824 = scalar_lea.vmem %s16, %s823
        %p825 = scmp.lt.s32.totalorder %s42, 2
        %s826 = scalar_select %p825, %s42, 2
        %s827 = smul.addr %s826, 2
        %s828 = scalar_lea.vmem %s17, %s827
        %p830 = scmp.eq.s32.totalorder %s42, 0
        // Predicated region
        $region109: #{tpu_custom_call.1} parent=91 // pred_check
          %p831 = pneg %p830
        $region110: #{tpu_custom_call.1} parent=91 // pred_check_branch
          %833 = sbr.rel (%p831) target = $region112
        $region111: #{tpu_custom_call.1} parent=91 // pred_region
          %v834 = vld [vmem:[%s0] sm:$0xff]
          %v835 = vld [vmem:[%s0 + $0x8] sm:$0xff]
          %836 = vst [vmem:[#allocation2] sm:$0xff] %v834
          %837 = vst [vmem:[#allocation2 + $0x8] sm:$0xff] %v835
          %v838 = vld [vmem:[%s1] sm:$0xff]
          %839 = vst [vmem:[#allocation3] sm:$0xff] %v838
        $region112: #{tpu_custom_call.1} parent=91 // pred_fallthru
          _
        %p840 = scmp.lt.s32.totalorder %s42, 2
        // Predicated region
        $region113: #{tpu_custom_call.1} parent=91 // pred_check
          %p841 = pneg %p840
        $region114: #{tpu_custom_call.1} parent=91 // pred_check_branch
          %843 = sbr.rel (%p841) target = $region116
        $region115: #{tpu_custom_call.1} parent=91 // pred_region
          %v844 = vld [vmem:[#allocation2] sm:$0xff]
          %v845 = vld [vmem:[#allocation2 + $0x8] sm:$0xff]
          %v846 = vpack.c.bf16 %v845, %v844
          %v847 = vld [vmem:[%s691] sm:$0xf]
          %v848 = vld [vmem:[%s691 + $0x4] sm:$0xf]
          %v849 = vld [vmem:[%s691 + $0x8] sm:$0xf]
          %v850 = vld [vmem:[%s691 + $0xc] sm:$0xf]
          %v851 = vld [vmem:[%s691 + $0x10] sm:$0xf]
          %v852 = vld [vmem:[%s691 + $0x14] sm:$0xf]
          %v853 = vld [vmem:[%s691 + $0x18] sm:$0xf]
          %v854 = vld [vmem:[%s691 + $0x1c] sm:$0xf]
          %v855 = vld [vmem:[%s691 + $0x20] sm:$0xf]
          %v856 = vld [vmem:[%s691 + $0x24] sm:$0xf]
          %v857 = vld [vmem:[%s691 + $0x28] sm:$0xf]
          %v858 = vld [vmem:[%s691 + $0x2c] sm:$0xf]
          %v859 = vld [vmem:[%s691 + $0x30] sm:$0xf]
          %v860 = vld [vmem:[%s691 + $0x34] sm:$0xf]
          %v861 = vld [vmem:[%s691 + $0x38] sm:$0xf]
          %v862 = vld [vmem:[%s691 + $0x3c] sm:$0xf]
          %v863 = vld [vmem:[%s808] sm:$0x1]
          %v865 = vlaneseq
          %v866 = vshrl.u32 %v865, 7
          %v867 = vsub.s32 0, %v866
          %v868 = vrot.slane %v863, %v867
          %v886 = vunpack.c.l.b16 %v847
          %v887 = vunpack.c.l.b16 %v848
          %v888 = vunpack.c.l.b16 %v849
          %v889 = vunpack.c.l.b16 %v850
          %v890 = vunpack.c.l.b16 %v851
          %v891 = vunpack.c.l.b16 %v852
          %v892 = vunpack.c.l.b16 %v853
          %v893 = vunpack.c.l.b16 %v854
          %v894 = vunpack.c.l.b16 %v855
          %v895 = vunpack.c.l.b16 %v856
          %v896 = vunpack.c.l.b16 %v857
          %v897 = vunpack.c.l.b16 %v858
          %v898 = vunpack.c.l.b16 %v859
          %v899 = vunpack.c.l.b16 %v860
          %v900 = vunpack.c.l.b16 %v861
          %v901 = vunpack.c.l.b16 %v862
          %v902 = vpack.c.b16 %v887, %v886
          %v903 = vpack.c.b16 %v889, %v888
          %v904 = vpack.c.b16 %v891, %v890
          %v905 = vpack.c.b16 %v893, %v892
          %v906 = vpack.c.b16 %v895, %v894
          %v907 = vpack.c.b16 %v897, %v896
          %v908 = vpack.c.b16 %v899, %v898
          %v909 = vpack.c.b16 %v901, %v900
          %918 = vmatprep.subr.bf16.mxu0 0
          %919 = vmatpush1.bf16.msra.mxu0 %v902
          %920 = vmatprep.subr.bf16.mxu0 0
          %921 = vmatpush1.bf16.msra.mxu0 %v903
          %922 = vmatprep.subr.bf16.mxu0 0
          %923 = vmatpush1.bf16.msra.mxu0 %v904
          %924 = vmatprep.subr.bf16.mxu0 0
          %925 = vmatpush1.bf16.msra.mxu0 %v905
          %926 = vmatprep.subr.bf16.mxu0 0
          %927 = vmatpush1.bf16.msra.mxu0 %v906
          %928 = vmatprep.subr.bf16.mxu0 0
          %929 = vmatpush1.bf16.msra.mxu0 %v907
          %930 = vmatprep.subr.bf16.mxu0 0
          %931 = vmatpush1.bf16.msra.mxu0 %v908
          %932 = vmatprep.subr.bf16.mxu0 0
          %933 = vmatpush1.bf16.msra.mxu0 %v909
          %934 = vmatprep.subr.bf16.mxu0 0
          %935 = vmatpush1.bf16.msra.mxu0 0
          %936 = vmatprep.subr.bf16.mxu0 0
          %937 = vmatpush1.bf16.msra.mxu0 0
          %938 = vmatprep.subr.bf16.mxu0 0
          %939 = vmatpush1.bf16.msra.mxu0 0
          %940 = vmatprep.subr.bf16.mxu0 0
          %941 = vmatpush1.bf16.msra.mxu0 0
          %942 = vmatprep.subr.bf16.mxu0 0
          %943 = vmatpush1.bf16.msra.mxu0 0
          %944 = vmatprep.subr.bf16.mxu0 0
          %945 = vmatpush1.bf16.msra.mxu0 0
          %946 = vmatprep.subr.bf16.mxu0 0
          %947 = vmatpush1.bf16.msra.mxu0 0
          %948 = vmatprep.subr.bf16.mxu0 0
          %949 = vmatpush1.bf16.msra.mxu0 0
          %950 = vmatprep.mubr.bf16.mxu0 0
          %951 = vmatmul.mubr.bf16.gmra.mrb[0].mxu0 %v846
          %v952 = vpop.f32.mrb[0].mxu0
          %v953 = vadd.f32 %v868, %v952
          %v954 = vpop.f32.mrb[0].mxu0
          %v955 = vpop.f32.mrb[0].mxu0
          %v956 = vadd.f32 %v868, %v955
          %v957 = vpop.f32.mrb[0].mxu0
          %958 = vdwg.mxu0
          %959 = vst [vmem:[#allocation2] sm:$0xff] %v953
          %960 = vst [vmem:[#allocation2 + $0x8] sm:$0xff] %v956
          %v961 = vld [vmem:[#allocation3] sm:$0xff]
          %v962 = vpack.c.bf16 %v961, %v961
          %v963 = vld [vmem:[%s700] sm:$0xf]
          %v964 = vld [vmem:[%s700 + $0x4] sm:$0xf]
          %v965 = vld [vmem:[%s700 + $0x8] sm:$0xf]
          %v966 = vld [vmem:[%s700 + $0xc] sm:$0xf]
          %v967 = vld [vmem:[%s700 + $0x10] sm:$0xf]
          %v968 = vld [vmem:[%s700 + $0x14] sm:$0xf]
          %v969 = vld [vmem:[%s700 + $0x18] sm:$0xf]
          %v970 = vld [vmem:[%s700 + $0x1c] sm:$0xf]
          %v971 = vld [vmem:[%s700 + $0x20] sm:$0xf]
          %v972 = vld [vmem:[%s700 + $0x24] sm:$0xf]
          %v973 = vld [vmem:[%s700 + $0x28] sm:$0xf]
          %v974 = vld [vmem:[%s700 + $0x2c] sm:$0xf]
          %v975 = vld [vmem:[%s700 + $0x30] sm:$0xf]
          %v976 = vld [vmem:[%s700 + $0x34] sm:$0xf]
          %v977 = vld [vmem:[%s700 + $0x38] sm:$0xf]
          %v978 = vld [vmem:[%s700 + $0x3c] sm:$0xf]
          %v979 = vld [vmem:[%s811] sm:$0x1]
          %v981 = vlaneseq
          %v982 = vshrl.u32 %v981, 7
          %v983 = vsub.s32 0, %v982
          %v984 = vrot.slane %v979, %v983
          %v1002 = vunpack.c.l.b16 %v963
          %v1003 = vunpack.c.l.b16 %v964
          %v1004 = vunpack.c.l.b16 %v965
          %v1005 = vunpack.c.l.b16 %v966
          %v1006 = vunpack.c.l.b16 %v967
          %v1007 = vunpack.c.l.b16 %v968
          %v1008 = vunpack.c.l.b16 %v969
          %v1009 = vunpack.c.l.b16 %v970
          %v1010 = vunpack.c.l.b16 %v971
          %v1011 = vunpack.c.l.b16 %v972
          %v1012 = vunpack.c.l.b16 %v973
          %v1013 = vunpack.c.l.b16 %v974
          %v1014 = vunpack.c.l.b16 %v975
          %v1015 = vunpack.c.l.b16 %v976
          %v1016 = vunpack.c.l.b16 %v977
          %v1017 = vunpack.c.l.b16 %v978
          %v1018 = vpack.c.b16 %v1003, %v1002
          %v1019 = vpack.c.b16 %v1005, %v1004
          %v1020 = vpack.c.b16 %v1007, %v1006
          %v1021 = vpack.c.b16 %v1009, %v1008
          %v1022 = vpack.c.b16 %v1011, %v1010
          %v1023 = vpack.c.b16 %v1013, %v1012
          %v1024 = vpack.c.b16 %v1015, %v1014
          %v1025 = vpack.c.b16 %v1017, %v1016
          %1034 = vmatprep.subr.bf16.mxu0 0
          %1035 = vmatpush1.bf16.msra.mxu0 %v1018
          %1036 = vmatprep.subr.bf16.mxu0 0
          %1037 = vmatpush1.bf16.msra.mxu0 %v1019
          %1038 = vmatprep.subr.bf16.mxu0 0
          %1039 = vmatpush1.bf16.msra.mxu0 %v1020
          %1040 = vmatprep.subr.bf16.mxu0 0
          %1041 = vmatpush1.bf16.msra.mxu0 %v1021
          %1042 = vmatprep.subr.bf16.mxu0 0
          %1043 = vmatpush1.bf16.msra.mxu0 %v1022
          %1044 = vmatprep.subr.bf16.mxu0 0
          %1045 = vmatpush1.bf16.msra.mxu0 %v1023
          %1046 = vmatprep.subr.bf16.mxu0 0
          %1047 = vmatpush1.bf16.msra.mxu0 %v1024
          %1048 = vmatprep.subr.bf16.mxu0 0
          %1049 = vmatpush1.bf16.msra.mxu0 %v1025
          %1050 = vmatprep.subr.bf16.mxu0 0
          %1051 = vmatpush1.bf16.msra.mxu0 0
          %1052 = vmatprep.subr.bf16.mxu0 0
          %1053 = vmatpush1.bf16.msra.mxu0 0
          %1054 = vmatprep.subr.bf16.mxu0 0
          %1055 = vmatpush1.bf16.msra.mxu0 0
          %1056 = vmatprep.subr.bf16.mxu0 0
          %1057 = vmatpush1.bf16.msra.mxu0 0
          %1058 = vmatprep.subr.bf16.mxu0 0
          %1059 = vmatpush1.bf16.msra.mxu0 0
          %1060 = vmatprep.subr.bf16.mxu0 0
          %1061 = vmatpush1.bf16.msra.mxu0 0
          %1062 = vmatprep.subr.bf16.mxu0 0
          %1063 = vmatpush1.bf16.msra.mxu0 0
          %1064 = vmatprep.subr.bf16.mxu0 0
          %1065 = vmatpush1.bf16.msra.mxu0 0
          %1066 = vmatprep.mubr.bf16.mxu0 0
          %1067 = vmatmul.mubr.bf16.gmra.mrb[0].mxu0 %v962
          %v1068 = vpop.f32.mrb[0].mxu0
          %v1069 = vadd.f32 %v984, %v1068
          %v1070 = vpop.f32.mrb[0].mxu0
          %v1071 = vpop.f32.mrb[0].mxu0
          %v1072 = vpop.f32.mrb[0].mxu0
          %1073 = vdwg.mxu0
          %1074 = vst [vmem:[#allocation3] sm:$0xff] %v1069
        $region116: #{tpu_custom_call.1} parent=91 // pred_fallthru
          _
        %v1075 = vld [vmem:[%s2] sm:$0xf]
        %v1076 = vld [vmem:[%s2 + $0x4] sm:$0xf]
        %v1077 = vld [vmem:[%s2 + $0x8] sm:$0xf]
        %v1078 = vld [vmem:[%s815] sm:$0xf]
        %v1079 = vld [vmem:[%s818] sm:$0x1]
        %v1081 = vlaneseq
        %v1082 = vshrl.u32 %v1081, 7
        %v1083 = vsub.s32 0, %v1082
        %v1084 = vrot.slane %v1079, %v1083
        %v1089 = vunpack.c.l.b16 %v1075
        %v1090 = vunpack.c.l.b16 %v1076
        %v1091 = vunpack.c.l.b16 %v1077
        %v1092 = vpack.c.b16 %v1090, %v1089
        %v1093 = vpack.c.b16 %v1091, %v1091
        %vm1094 = vcmask 64512
        %v1096 = vsel %vm1094, %v1092, 0
        %v1099 = vsel %vm1094, %v1093, 0
        %vm1101 = vcmask 1043456
        %v1103 = vsel %vm1101, %v1078, 0
        %1105 = vmatprep.subr.bf16.mxu0 0
        %1106 = vmatpush1.bf16.msra.mxu0 %v1103
        %1107 = vmatprep.subr.bf16.mxu0 0
        %1108 = vmatpush1.bf16.msra.mxu0 0
        %1109 = vmatprep.subr.bf16.mxu0 0
        %1110 = vmatpush1.bf16.msra.mxu0 0
        %1111 = vmatprep.subr.bf16.mxu0 0
        %1112 = vmatpush1.bf16.msra.mxu0 0
        %1113 = vmatprep.subr.bf16.mxu0 0
        %1114 = vmatpush1.bf16.msra.mxu0 0
        %1115 = vmatprep.subr.bf16.mxu0 0
        %1116 = vmatpush1.bf16.msra.mxu0 0
        %1117 = vmatprep.subr.bf16.mxu0 0
        %1118 = vmatpush1.bf16.msra.mxu0 0
        %1119 = vmatprep.subr.bf16.mxu0 0
        %1120 = vmatpush1.bf16.msra.mxu0 0
        %1121 = vmatprep.subr.bf16.mxu0 0
        %1122 = vmatpush1.bf16.msra.mxu0 0
        %1123 = vmatprep.subr.bf16.mxu0 0
        %1124 = vmatpush1.bf16.msra.mxu0 0
        %1125 = vmatprep.subr.bf16.mxu0 0
        %1126 = vmatpush1.bf16.msra.mxu0 0
        %1127 = vmatprep.subr.bf16.mxu0 0
        %1128 = vmatpush1.bf16.msra.mxu0 0
        %1129 = vmatprep.subr.bf16.mxu0 0
        %1130 = vmatpush1.bf16.msra.mxu0 0
        %1131 = vmatprep.subr.bf16.mxu0 0
        %1132 = vmatpush1.bf16.msra.mxu0 0
        %1133 = vmatprep.subr.bf16.mxu0 0
        %1134 = vmatpush1.bf16.msra.mxu0 0
        %1135 = vmatprep.subr.bf16.mxu0 0
        %1136 = vmatpush1.bf16.msra.mxu0 0
        %1137 = vmatprep.mubr.bf16.mxu0 0
        %1138 = vmatmul.mubr.bf16.gmra.mrb[0].mxu0 %v1096
        %v1139 = vpop.f32.mrb[0].mxu0
        %v1140 = vadd.f32 %v1084, %v1139
        %v1141 = vpop.f32.mrb[0].mxu0
        %v1142 = vpop.f32.mrb[0].mxu0
        %v1143 = vadd.f32 %v1084, %v1142
        %v1144 = vpop.f32.mrb[0].mxu0
        %1145 = vmatprep.mubr.bf16.mxu0 0
        %1146 = vmatmul.mubr.bf16.gmra.mrb[0].mxu0 %v1099
        %v1147 = vpop.f32.mrb[0].mxu0
        %v1148 = vadd.f32 %v1084, %v1147
        %v1149 = vpop.f32.mrb[0].mxu0
        %v1150 = vpop.f32.mrb[0].mxu0
        %v1151 = vpop.f32.mrb[0].mxu0
        %1152 = vdwg.mxu0
        %v1153 = vld [vmem:[%s709] sm:$0xf]
        %v1154 = vld [vmem:[%s709 + $0x4] sm:$0xf]
        %v1155 = vld [vmem:[%s709 + $0x8] sm:$0xf]
        %v1156 = vld [vmem:[%s709 + $0xc] sm:$0xf]
        %v1157 = vld [vmem:[%s709 + $0x10] sm:$0xf]
        %v1158 = vld [vmem:[%s709 + $0x14] sm:$0xf]
        %v1159 = vld [vmem:[%s709 + $0x18] sm:$0xf]
        %v1160 = vld [vmem:[%s709 + $0x1c] sm:$0xf]
        %v1161 = vld [vmem:[%s709 + $0x20] sm:$0xf]
        %v1162 = vld [vmem:[%s709 + $0x24] sm:$0xf]
        %v1163 = vld [vmem:[%s709 + $0x28] sm:$0xf]
        %v1164 = vld [vmem:[%s709 + $0x2c] sm:$0xf]
        %v1165 = vld [vmem:[%s709 + $0x30] sm:$0xf]
        %v1166 = vld [vmem:[%s709 + $0x34] sm:$0xf]
        %v1167 = vld [vmem:[%s709 + $0x38] sm:$0xf]
        %v1168 = vld [vmem:[%s709 + $0x3c] sm:$0xf]
        %v1169 = vld [vmem:[%s821] sm:$0x1]
        %v1170 = vld [vmem:[%s718] sm:$0xf]
        %v1171 = vld [vmem:[%s718 + $0x4] sm:$0xf]
        %v1172 = vld [vmem:[%s718 + $0x8] sm:$0xf]
        %v1173 = vld [vmem:[%s718 + $0xc] sm:$0xf]
        %v1174 = vld [vmem:[%s718 + $0x10] sm:$0xf]
        %v1175 = vld [vmem:[%s718 + $0x14] sm:$0xf]
        %v1176 = vld [vmem:[%s718 + $0x18] sm:$0xf]
        %v1177 = vld [vmem:[%s718 + $0x1c] sm:$0xf]
        %v1178 = vld [vmem:[%s718 + $0x20] sm:$0xf]
        %v1179 = vld [vmem:[%s718 + $0x24] sm:$0xf]
        %v1180 = vld [vmem:[%s718 + $0x28] sm:$0xf]
        %v1181 = vld [vmem:[%s718 + $0x2c] sm:$0xf]
        %v1182 = vld [vmem:[%s718 + $0x30] sm:$0xf]
        %v1183 = vld [vmem:[%s718 + $0x34] sm:$0xf]
        %v1184 = vld [vmem:[%s718 + $0x38] sm:$0xf]
        %v1185 = vld [vmem:[%s718 + $0x3c] sm:$0xf]
        %v1186 = vld [vmem:[%s824] sm:$0x1]
        %v1187 = vld [vmem:[#allocation2] sm:$0xff]
        %v1188 = vld [vmem:[#allocation2 + $0x8] sm:$0xff]
        %v1189 = vld [vmem:[#allocation3] sm:$0xff]
        %v1190 = vld [vmem:[%s3] sm:$0xf]
        %v1191 = vld [vmem:[%s3 + $0x4] sm:$0xf]
        %v1192 = vld [vmem:[%s3 + $0x8] sm:$0xf]
        %v1193 = vld [vmem:[%s4] sm:$0xf]
        %v1194 = vpack.c.bf16 %v1188, %v1187
        %v1198 = vunpack.c.l.b16 %v1190
        %v1199 = vunpack.c.l.b16 %v1191
        %v1200 = vunpack.c.l.b16 %v1192
        %v1201 = vpack.c.b16 %v1199, %v1198
        %v1202 = vpack.c.b16 %v1200, %v1200
        %vm1203 = vcmask 130048
        %v1205 = vsel %vm1203, %v1201, 0
        %v1208 = vsel %vm1203, %v1202, 0
        %1210 = vmatprep.subr.bf16.mxu0 0
        %1211 = vmatpush1.bf16.msra.mxu0 %v1194
        %1212 = vmatprep.subr.bf16.mxu0 0
        %1213 = vmatpush1.bf16.msra.mxu0 0
        %1214 = vmatprep.subr.bf16.mxu0 0
        %1215 = vmatpush1.bf16.msra.mxu0 0
        %1216 = vmatprep.subr.bf16.mxu0 0
        %1217 = vmatpush1.bf16.msra.mxu0 0
        %1218 = vmatprep.subr.bf16.mxu0 0
        %1219 = vmatpush1.bf16.msra.mxu0 0
        %1220 = vmatprep.subr.bf16.mxu0 0
        %1221 = vmatpush1.bf16.msra.mxu0 0
        %1222 = vmatprep.subr.bf16.mxu0 0
        %1223 = vmatpush1.bf16.msra.mxu0 0
        %1224 = vmatprep.subr.bf16.mxu0 0
        %1225 = vmatpush1.bf16.msra.mxu0 0
        %1226 = vmatprep.subr.bf16.mxu0 0
        %1227 = vmatpush1.bf16.msra.mxu0 0
        %1228 = vmatprep.subr.bf16.mxu0 0
        %1229 = vmatpush1.bf16.msra.mxu0 0
        %1230 = vmatprep.subr.bf16.mxu0 0
        %1231 = vmatpush1.bf16.msra.mxu0 0
        %1232 = vmatprep.subr.bf16.mxu0 0
        %1233 = vmatpush1.bf16.msra.mxu0 0
        %1234 = vmatprep.subr.bf16.mxu0 0
        %1235 = vmatpush1.bf16.msra.mxu0 0
        %1236 = vmatprep.subr.bf16.mxu0 0
        %1237 = vmatpush1.bf16.msra.mxu0 0
        %1238 = vmatprep.subr.bf16.mxu0 0
        %1239 = vmatpush1.bf16.msra.mxu0 0
        %1240 = vmatprep.subr.bf16.mxu0 0
        %1241 = vmatpush1.bf16.msra.mxu0 0
        %1242 = vmatprep.mubr.bf16.mxu0 0
        %1243 = vmatmul.mubr.bf16.gmra.mrb[0].mxu0 %v1205
        %v1244 = vpop.f32.mrb[0].mxu0
        %v1245 = vadd.f32 %v1140, %v1244
        %v1246 = vpop.f32.mrb[0].mxu0
        %v1247 = vpop.f32.mrb[0].mxu0
        %v1248 = vadd.f32 %v1143, %v1247
        %v1249 = vpop.f32.mrb[0].mxu0
        %1250 = vmatprep.mubr.bf16.mxu0 0
        %1251 = vmatmul.mubr.bf16.gmra.mrb[0].mxu0 %v1208
        %v1252 = vpop.f32.mrb[0].mxu0
        %v1253 = vadd.f32 %v1148, %v1252
        %v1254 = vpop.f32.mrb[0].mxu0
        %v1255 = vpop.f32.mrb[0].mxu0
        %v1256 = vpop.f32.mrb[0].mxu0
        %1257 = vdwg.mxu0
        %v1258 = vmax.f32 %v1245, 0.0
        %v1259 = vmax.f32 %v1248, 0.0
        %v1260 = vmax.f32 %v1253, 0.0
        %v1261 = vpack.c.bf16 %v1259, %v1258
        %v1262 = vpack.c.bf16 %v1260, %v1260
        %v1263 = vmul.f32 %v1189, 1.5
        %vm1264 = vcmask 195584
        %v1266 = vsel %vm1264, %v1193, 0
        %v1269 = vsel %vm1101, %v1262, 0
        %1271 = vmatprep.subr.bf16.mxu0 0
        %1272 = vmatpush1.bf16.msra.mxu0 %v1261
        %1273 = vmatprep.subr.bf16.mxu0 0
        %1274 = vmatpush1.bf16.msra.mxu0 %v1269
        %1275 = vmatprep.subr.bf16.mxu0 0
        %1276 = vmatpush1.bf16.msra.mxu0 0
        %1277 = vmatprep.subr.bf16.mxu0 0
        %1278 = vmatpush1.bf16.msra.mxu0 0
        %1279 = vmatprep.subr.bf16.mxu0 0
        %1280 = vmatpush1.bf16.msra.mxu0 0
        %1281 = vmatprep.subr.bf16.mxu0 0
        %1282 = vmatpush1.bf16.msra.mxu0 0
        %1283 = vmatprep.subr.bf16.mxu0 0
        %1284 = vmatpush1.bf16.msra.mxu0 0
        %1285 = vmatprep.subr.bf16.mxu0 0
        %1286 = vmatpush1.bf16.msra.mxu0 0
        %1287 = vmatprep.subr.bf16.mxu0 0
        %1288 = vmatpush1.bf16.msra.mxu0 0
        %1289 = vmatprep.subr.bf16.mxu0 0
        %1290 = vmatpush1.bf16.msra.mxu0 0
        %1291 = vmatprep.subr.bf16.mxu0 0
        %1292 = vmatpush1.bf16.msra.mxu0 0
        %1293 = vmatprep.subr.bf16.mxu0 0
        %1294 = vmatpush1.bf16.msra.mxu0 0
        %1295 = vmatprep.subr.bf16.mxu0 0
        %1296 = vmatpush1.bf16.msra.mxu0 0
        %1297 = vmatprep.subr.bf16.mxu0 0
        %1298 = vmatpush1.bf16.msra.mxu0 0
        %1299 = vmatprep.subr.bf16.mxu0 0
        %1300 = vmatpush1.bf16.msra.mxu0 0
        %1301 = vmatprep.subr.bf16.mxu0 0
        %1302 = vmatpush1.bf16.msra.mxu0 0
        %1303 = vmatprep.mubr.bf16.mxu0 0
        %1304 = vmatmul.mubr.bf16.gmra.mrb[0].mxu0 %v1266
        %v1305 = vpop.f32.mrb[0].mxu0
        %v1306 = vadd.f32 %v1263, %v1305
        %v1307 = vpop.f32.mrb[0].mxu0
        %v1308 = vpop.f32.mrb[0].mxu0
        %v1309 = vpop.f32.mrb[0].mxu0
        %1310 = vdwg.mxu0
        %v1311 = vpack.c.bf16 %v1306, %v1306
        %v1313 = vlaneseq
        %v1314 = vshrl.u32 %v1313, 7
        %v1315 = vsub.s32 0, %v1314
        %v1316 = vrot.slane %v1169, %v1315
        %v1334 = vunpack.c.l.b16 %v1153
        %v1335 = vunpack.c.l.b16 %v1154
        %v1336 = vunpack.c.l.b16 %v1155
        %v1337 = vunpack.c.l.b16 %v1156
        %v1338 = vunpack.c.l.b16 %v1157
        %v1339 = vunpack.c.l.b16 %v1158
        %v1340 = vunpack.c.l.b16 %v1159
        %v1341 = vunpack.c.l.b16 %v1160
        %v1342 = vunpack.c.l.b16 %v1161
        %v1343 = vunpack.c.l.b16 %v1162
        %v1344 = vunpack.c.l.b16 %v1163
        %v1345 = vunpack.c.l.b16 %v1164
        %v1346 = vunpack.c.l.b16 %v1165
        %v1347 = vunpack.c.l.b16 %v1166
        %v1348 = vunpack.c.l.b16 %v1167
        %v1349 = vunpack.c.l.b16 %v1168
        %v1350 = vpack.c.b16 %v1335, %v1334
        %v1351 = vpack.c.b16 %v1337, %v1336
        %v1352 = vpack.c.b16 %v1339, %v1338
        %v1353 = vpack.c.b16 %v1341, %v1340
        %v1354 = vpack.c.b16 %v1343, %v1342
        %v1355 = vpack.c.b16 %v1345, %v1344
        %v1356 = vpack.c.b16 %v1347, %v1346
        %v1357 = vpack.c.b16 %v1349, %v1348
        %1366 = vmatprep.subr.bf16.mxu0 0
        %1367 = vmatpush1.bf16.msra.mxu0 %v1350
        %1368 = vmatprep.subr.bf16.mxu0 0
        %1369 = vmatpush1.bf16.msra.mxu0 %v1351
        %1370 = vmatprep.subr.bf16.mxu0 0
        %1371 = vmatpush1.bf16.msra.mxu0 %v1352
        %1372 = vmatprep.subr.bf16.mxu0 0
        %1373 = vmatpush1.bf16.msra.mxu0 %v1353
        %1374 = vmatprep.subr.bf16.mxu0 0
        %1375 = vmatpush1.bf16.msra.mxu0 %v1354
        %1376 = vmatprep.subr.bf16.mxu0 0
        %1377 = vmatpush1.bf16.msra.mxu0 %v1355
        %1378 = vmatprep.subr.bf16.mxu0 0
        %1379 = vmatpush1.bf16.msra.mxu0 %v1356
        %1380 = vmatprep.subr.bf16.mxu0 0
        %1381 = vmatpush1.bf16.msra.mxu0 %v1357
        %1382 = vmatprep.subr.bf16.mxu0 0
        %1383 = vmatpush1.bf16.msra.mxu0 0
        %1384 = vmatprep.subr.bf16.mxu0 0
        %1385 = vmatpush1.bf16.msra.mxu0 0
        %1386 = vmatprep.subr.bf16.mxu0 0
        %1387 = vmatpush1.bf16.msra.mxu0 0
        %1388 = vmatprep.subr.bf16.mxu0 0
        %1389 = vmatpush1.bf16.msra.mxu0 0
        %1390 = vmatprep.subr.bf16.mxu0 0
        %1391 = vmatpush1.bf16.msra.mxu0 0
        %1392 = vmatprep.subr.bf16.mxu0 0
        %1393 = vmatpush1.bf16.msra.mxu0 0
        %1394 = vmatprep.subr.bf16.mxu0 0
        %1395 = vmatpush1.bf16.msra.mxu0 0
        %1396 = vmatprep.subr.bf16.mxu0 0
        %1397 = vmatpush1.bf16.msra.mxu0 0
        %1398 = vmatprep.mubr.bf16.mxu0 0
        %1399 = vmatmul.mubr.bf16.gmra.mrb[0].mxu0 %v1311
        %v1400 = vpop.f32.mrb[0].mxu0
        %v1401 = vadd.f32 %v1316, %v1400
        %v1402 = vpop.f32.mrb[0].mxu0
        %v1403 = vpop.f32.mrb[0].mxu0
        %v1404 = vpop.f32.mrb[0].mxu0
        %1405 = vdwg.mxu0
        %v1406 = vmax.f32 %v1401, 0.0
        %v1407 = vpack.c.bf16 %v1406, %v1406
        %v1409 = vlaneseq
        %v1410 = vshrl.u32 %v1409, 7
        %v1411 = vsub.s32 0, %v1410
        %v1412 = vrot.slane %v1186, %v1411
        %v1430 = vunpack.c.l.b16 %v1170
        %v1431 = vunpack.c.l.b16 %v1171
        %v1432 = vunpack.c.l.b16 %v1172
        %v1433 = vunpack.c.l.b16 %v1173
        %v1434 = vunpack.c.l.b16 %v1174
        %v1435 = vunpack.c.l.b16 %v1175
        %v1436 = vunpack.c.l.b16 %v1176
        %v1437 = vunpack.c.l.b16 %v1177
        %v1438 = vunpack.c.l.b16 %v1178
        %v1439 = vunpack.c.l.b16 %v1179
        %v1440 = vunpack.c.l.b16 %v1180
        %v1441 = vunpack.c.l.b16 %v1181
        %v1442 = vunpack.c.l.b16 %v1182
        %v1443 = vunpack.c.l.b16 %v1183
        %v1444 = vunpack.c.l.b16 %v1184
        %v1445 = vunpack.c.l.b16 %v1185
        %v1446 = vpack.c.b16 %v1431, %v1430
        %v1447 = vpack.c.b16 %v1433, %v1432
        %v1448 = vpack.c.b16 %v1435, %v1434
        %v1449 = vpack.c.b16 %v1437, %v1436
        %v1450 = vpack.c.b16 %v1439, %v1438
        %v1451 = vpack.c.b16 %v1441, %v1440
        %v1452 = vpack.c.b16 %v1443, %v1442
        %v1453 = vpack.c.b16 %v1445, %v1444
        %1462 = vmatprep.subr.bf16.mxu0 0
        %1463 = vmatpush1.bf16.msra.mxu0 %v1446
        %1464 = vmatprep.subr.bf16.mxu0 0
        %1465 = vmatpush1.bf16.msra.mxu0 %v1447
        %1466 = vmatprep.subr.bf16.mxu0 0
        %1467 = vmatpush1.bf16.msra.mxu0 %v1448
        %1468 = vmatprep.subr.bf16.mxu0 0
        %1469 = vmatpush1.bf16.msra.mxu0 %v1449
        %1470 = vmatprep.subr.bf16.mxu0 0
        %1471 = vmatpush1.bf16.msra.mxu0 %v1450
        %1472 = vmatprep.subr.bf16.mxu0 0
        %1473 = vmatpush1.bf16.msra.mxu0 %v1451
        %1474 = vmatprep.subr.bf16.mxu0 0
        %1475 = vmatpush1.bf16.msra.mxu0 %v1452
        %1476 = vmatprep.subr.bf16.mxu0 0
        %1477 = vmatpush1.bf16.msra.mxu0 %v1453
        %1478 = vmatprep.subr.bf16.mxu0 0
        %1479 = vmatpush1.bf16.msra.mxu0 0
        %1480 = vmatprep.subr.bf16.mxu0 0
        %1481 = vmatpush1.bf16.msra.mxu0 0
        %1482 = vmatprep.subr.bf16.mxu0 0
        %1483 = vmatpush1.bf16.msra.mxu0 0
        %1484 = vmatprep.subr.bf16.mxu0 0
        %1485 = vmatpush1.bf16.msra.mxu0 0
        %1486 = vmatprep.subr.bf16.mxu0 0
        %1487 = vmatpush1.bf16.msra.mxu0 0
        %1488 = vmatprep.subr.bf16.mxu0 0
        %1489 = vmatpush1.bf16.msra.mxu0 0
        %1490 = vmatprep.subr.bf16.mxu0 0
        %1491 = vmatpush1.bf16.msra.mxu0 0
        %1492 = vmatprep.subr.bf16.mxu0 0
        %1493 = vmatpush1.bf16.msra.mxu0 0
        %1494 = vmatprep.mubr.bf16.mxu0 0
        %1495 = vmatmul.mubr.bf16.gmra.mrb[0].mxu0 %v1407
        %v1496 = vpop.f32.mrb[0].mxu0
        %v1497 = vadd.f32 %v1412, %v1496
        %v1498 = vpop.f32.mrb[0].mxu0
        %v1499 = vpop.f32.mrb[0].mxu0
        %v1500 = vpop.f32.mrb[0].mxu0
        %1501 = vdwg.mxu0
        %1502 = vst [vmem:[#allocation3] sm:$0xff] %v1497
        %v1503 = vld [vmem:[#allocation2] sm:$0xff]
        %v1504 = vld [vmem:[#allocation2 + $0x8] sm:$0xff]
        %v1505 = vld [vmem:[%s5] sm:$0xf]
        %v1506 = vld [vmem:[%s5 + $0x4] sm:$0xf]
        %v1507 = vld [vmem:[%s5 + $0x8] sm:$0xf]
        %v1508 = vld [vmem:[%s6] sm:$0xf]
        %v1509 = vld [vmem:[%s6 + $0x4] sm:$0xf]
        %v1510 = vpack.c.bf16 %v1497, %v1497
        %v1514 = vunpack.c.l.b16 %v1505
        %v1515 = vunpack.c.l.b16 %v1506
        %v1516 = vunpack.c.l.b16 %v1507
        %v1517 = vpack.c.b16 %v1515, %v1514
        %v1518 = vpack.c.b16 %v1516, %v1516
        %v1520 = vsel %vm1094, %v1517, 0
        %v1523 = vsel %vm1094, %v1518, 0
        %v1526 = vsel %vm1101, %v1510, 0
        %1528 = vmatprep.subr.bf16.mxu0 0
        %1529 = vmatpush1.bf16.msra.mxu0 %v1526
        %1530 = vmatprep.subr.bf16.mxu0 0
        %1531 = vmatpush1.bf16.msra.mxu0 0
        %1532 = vmatprep.subr.bf16.mxu0 0
        %1533 = vmatpush1.bf16.msra.mxu0 0
        %1534 = vmatprep.subr.bf16.mxu0 0
        %1535 = vmatpush1.bf16.msra.mxu0 0
        %1536 = vmatprep.subr.bf16.mxu0 0
        %1537 = vmatpush1.bf16.msra.mxu0 0
        %1538 = vmatprep.subr.bf16.mxu0 0
        %1539 = vmatpush1.bf16.msra.mxu0 0
        %1540 = vmatprep.subr.bf16.mxu0 0
        %1541 = vmatpush1.bf16.msra.mxu0 0
        %1542 = vmatprep.subr.bf16.mxu0 0
        %1543 = vmatpush1.bf16.msra.mxu0 0
        %1544 = vmatprep.subr.bf16.mxu0 0
        %1545 = vmatpush1.bf16.msra.mxu0 0
        %1546 = vmatprep.subr.bf16.mxu0 0
        %1547 = vmatpush1.bf16.msra.mxu0 0
        %1548 = vmatprep.subr.bf16.mxu0 0
        %1549 = vmatpush1.bf16.msra.mxu0 0
        %1550 = vmatprep.subr.bf16.mxu0 0
        %1551 = vmatpush1.bf16.msra.mxu0 0
        %1552 = vmatprep.subr.bf16.mxu0 0
        %1553 = vmatpush1.bf16.msra.mxu0 0
        %1554 = vmatprep.subr.bf16.mxu0 0
        %1555 = vmatpush1.bf16.msra.mxu0 0
        %1556 = vmatprep.subr.bf16.mxu0 0
        %1557 = vmatpush1.bf16.msra.mxu0 0
        %1558 = vmatprep.subr.bf16.mxu0 0
        %1559 = vmatpush1.bf16.msra.mxu0 0
        %1560 = vmatprep.mubr.bf16.mxu0 0
        %1561 = vmatmul.mubr.bf16.gmra.mrb[0].mxu0 %v1520
        %v1562 = vpop.f32.mrb[0].mxu0
        %v1563 = vadd.f32 %v1140, %v1562
        %v1564 = vpop.f32.mrb[0].mxu0
        %v1565 = vpop.f32.mrb[0].mxu0
        %v1566 = vadd.f32 %v1143, %v1565
        %v1567 = vpop.f32.mrb[0].mxu0
        %1568 = vmatprep.mubr.bf16.mxu0 0
        %1569 = vmatmul.mubr.bf16.gmra.mrb[0].mxu0 %v1523
        %v1570 = vpop.f32.mrb[0].mxu0
        %v1571 = vadd.f32 %v1148, %v1570
        %v1572 = vpop.f32.mrb[0].mxu0
        %v1573 = vpop.f32.mrb[0].mxu0
        %v1574 = vpop.f32.mrb[0].mxu0
        %1575 = vdwg.mxu0
        %v1576 = vmax.f32 %v1563, 0.0
        %v1577 = vmax.f32 %v1566, 0.0
        %v1578 = vmax.f32 %v1571, 0.0
        %v1579 = vpack.c.bf16 %v1577, %v1576
        %v1580 = vpack.c.bf16 %v1578, %v1578
        %v1581 = vmul.f32 %v1503, 1.5
        %v1582 = vmul.f32 %v1504, 1.5
        %v1585 = vunpack.c.l.b16 %v1508
        %v1586 = vunpack.c.l.b16 %v1509
        %v1587 = vpack.c.b16 %v1586, %v1585
        %v1589 = vsel %vm1264, %v1587, 0
        %v1592 = vsel %vm1101, %v1580, 0
        %1594 = vmatprep.subr.bf16.mxu0 0
        %1595 = vmatpush1.bf16.msra.mxu0 %v1579
        %1596 = vmatprep.subr.bf16.mxu0 0
        %1597 = vmatpush1.bf16.msra.mxu0 %v1592
        %1598 = vmatprep.subr.bf16.mxu0 0
        %1599 = vmatpush1.bf16.msra.mxu0 0
        %1600 = vmatprep.subr.bf16.mxu0 0
        %1601 = vmatpush1.bf16.msra.mxu0 0
        %1602 = vmatprep.subr.bf16.mxu0 0
        %1603 = vmatpush1.bf16.msra.mxu0 0
        %1604 = vmatprep.subr.bf16.mxu0 0
        %1605 = vmatpush1.bf16.msra.mxu0 0
        %1606 = vmatprep.subr.bf16.mxu0 0
        %1607 = vmatpush1.bf16.msra.mxu0 0
        %1608 = vmatprep.subr.bf16.mxu0 0
        %1609 = vmatpush1.bf16.msra.mxu0 0
        %1610 = vmatprep.subr.bf16.mxu0 0
        %1611 = vmatpush1.bf16.msra.mxu0 0
        %1612 = vmatprep.subr.bf16.mxu0 0
        %1613 = vmatpush1.bf16.msra.mxu0 0
        %1614 = vmatprep.subr.bf16.mxu0 0
        %1615 = vmatpush1.bf16.msra.mxu0 0
        %1616 = vmatprep.subr.bf16.mxu0 0
        %1617 = vmatpush1.bf16.msra.mxu0 0
        %1618 = vmatprep.subr.bf16.mxu0 0
        %1619 = vmatpush1.bf16.msra.mxu0 0
        %1620 = vmatprep.subr.bf16.mxu0 0
        %1621 = vmatpush1.bf16.msra.mxu0 0
        %1622 = vmatprep.subr.bf16.mxu0 0
        %1623 = vmatpush1.bf16.msra.mxu0 0
        %1624 = vmatprep.subr.bf16.mxu0 0
        %1625 = vmatpush1.bf16.msra.mxu0 0
        %1626 = vmatprep.mubr.bf16.mxu0 0
        %1627 = vmatmul.mubr.bf16.gmra.mrb[0].mxu0 %v1589
        %v1628 = vpop.f32.mrb[0].mxu0
        %v1629 = vadd.f32 %v1581, %v1628
        %v1630 = vpop.f32.mrb[0].mxu0
        %v1631 = vpop.f32.mrb[0].mxu0
        %v1632 = vadd.f32 %v1582, %v1631
        %v1633 = vpop.f32.mrb[0].mxu0
        %1634 = vdwg.mxu0
        %v1635 = vpack.c.bf16 %v1632, %v1629
        %1636 = vmatprep.subr.bf16.mxu0 0
        %1637 = vmatpush1.bf16.msra.mxu0 %v1350
        %1638 = vmatprep.subr.bf16.mxu0 0
        %1639 = vmatpush1.bf16.msra.mxu0 %v1351
        %1640 = vmatprep.subr.bf16.mxu0 0
        %1641 = vmatpush1.bf16.msra.mxu0 %v1352
        %1642 = vmatprep.subr.bf16.mxu0 0
        %1643 = vmatpush1.bf16.msra.mxu0 %v1353
        %1644 = vmatprep.subr.bf16.mxu0 0
        %1645 = vmatpush1.bf16.msra.mxu0 %v1354
        %1646 = vmatprep.subr.bf16.mxu0 0
        %1647 = vmatpush1.bf16.msra.mxu0 %v1355
        %1648 = vmatprep.subr.bf16.mxu0 0
        %1649 = vmatpush1.bf16.msra.mxu0 %v1356
        %1650 = vmatprep.subr.bf16.mxu0 0
        %1651 = vmatpush1.bf16.msra.mxu0 %v1357
        %1652 = vmatprep.subr.bf16.mxu0 0
        %1653 = vmatpush1.bf16.msra.mxu0 0
        %1654 = vmatprep.subr.bf16.mxu0 0
        %1655 = vmatpush1.bf16.msra.mxu0 0
        %1656 = vmatprep.subr.bf16.mxu0 0
        %1657 = vmatpush1.bf16.msra.mxu0 0
        %1658 = vmatprep.subr.bf16.mxu0 0
        %1659 = vmatpush1.bf16.msra.mxu0 0
        %1660 = vmatprep.subr.bf16.mxu0 0
        %1661 = vmatpush1.bf16.msra.mxu0 0
        %1662 = vmatprep.subr.bf16.mxu0 0
        %1663 = vmatpush1.bf16.msra.mxu0 0
        %1664 = vmatprep.subr.bf16.mxu0 0
        %1665 = vmatpush1.bf16.msra.mxu0 0
        %1666 = vmatprep.subr.bf16.mxu0 0
        %1667 = vmatpush1.bf16.msra.mxu0 0
        %1668 = vmatprep.mubr.bf16.mxu0 0
        %1669 = vmatmul.mubr.bf16.gmra.mrb[0].mxu0 %v1635
        %v1670 = vpop.f32.mrb[0].mxu0
        %v1671 = vadd.f32 %v1316, %v1670
        %v1672 = vpop.f32.mrb[0].mxu0
        %v1673 = vpop.f32.mrb[0].mxu0
        %v1674 = vadd.f32 %v1316, %v1673
        %v1675 = vpop.f32.mrb[0].mxu0
        %1676 = vdwg.mxu0
        %v1677 = vmax.f32 %v1671, 0.0
        %v1678 = vmax.f32 %v1674, 0.0
        %v1679 = vpack.c.bf16 %v1678, %v1677
        %1680 = vmatprep.subr.bf16.mxu0 0
        %1681 = vmatpush1.bf16.msra.mxu0 %v1446
        %1682 = vmatprep.subr.bf16.mxu0 0
        %1683 = vmatpush1.bf16.msra.mxu0 %v1447
        %1684 = vmatprep.subr.bf16.mxu0 0
        %1685 = vmatpush1.bf16.msra.mxu0 %v1448
        %1686 = vmatprep.subr.bf16.mxu0 0
        %1687 = vmatpush1.bf16.msra.mxu0 %v1449
        %1688 = vmatprep.subr.bf16.mxu0 0
        %1689 = vmatpush1.bf16.msra.mxu0 %v1450
        %1690 = vmatprep.subr.bf16.mxu0 0
        %1691 = vmatpush1.bf16.msra.mxu0 %v1451
        %1692 = vmatprep.subr.bf16.mxu0 0
        %1693 = vmatpush1.bf16.msra.mxu0 %v1452
        %1694 = vmatprep.subr.bf16.mxu0 0
        %1695 = vmatpush1.bf16.msra.mxu0 %v1453
        %1696 = vmatprep.subr.bf16.mxu0 0
        %1697 = vmatpush1.bf16.msra.mxu0 0
        %1698 = vmatprep.subr.bf16.mxu0 0
        %1699 = vmatpush1.bf16.msra.mxu0 0
        %1700 = vmatprep.subr.bf16.mxu0 0
        %1701 = vmatpush1.bf16.msra.mxu0 0
        %1702 = vmatprep.subr.bf16.mxu0 0
        %1703 = vmatpush1.bf16.msra.mxu0 0
        %1704 = vmatprep.subr.bf16.mxu0 0
        %1705 = vmatpush1.bf16.msra.mxu0 0
        %1706 = vmatprep.subr.bf16.mxu0 0
        %1707 = vmatpush1.bf16.msra.mxu0 0
        %1708 = vmatprep.subr.bf16.mxu0 0
        %1709 = vmatpush1.bf16.msra.mxu0 0
        %1710 = vmatprep.subr.bf16.mxu0 0
        %1711 = vmatpush1.bf16.msra.mxu0 0
        %1712 = vmatprep.mubr.bf16.mxu0 0
        %1713 = vmatmul.mubr.bf16.gmra.mrb[0].mxu0 %v1679
        %v1714 = vpop.f32.mrb[0].mxu0
        %v1715 = vadd.f32 %v1412, %v1714
        %v1716 = vpop.f32.mrb[0].mxu0
        %v1717 = vpop.f32.mrb[0].mxu0
        %v1718 = vadd.f32 %v1412, %v1717
        %v1719 = vpop.f32.mrb[0].mxu0
        %1720 = vdwg.mxu0
        %1721 = vst [vmem:[#allocation2] sm:$0xff] %v1715
        %1722 = vst [vmem:[#allocation2 + $0x8] sm:$0xff] %v1718
        // Predicated region
        $region117: #{tpu_custom_call.1} parent=91 // pred_check
          %p1723 = pneg %p840
        $region118: #{tpu_custom_call.1} parent=91 // pred_check_branch
          %1725 = sbr.rel (%p1723) target = $region120
        $region119: #{tpu_custom_call.1} parent=91 // pred_region
          %v1726 = vld [vmem:[%s828] sm:$0x3]
          %v1727 = vld [vmem:[#allocation2] sm:$0xff]
          %v1728 = vld [vmem:[#allocation2 + $0x8] sm:$0xff]
          %v1729 = vlaneseq
          %v1730 = vshrl.u32 %v1729, 7
          %v1731 = vsub.s32 0, %v1730
          %v1732 = vrot.slane %v1726, %v1731
          %v1733 = vmul.f32 %v1727, %v1732
          %v1734 = vmul.f32 %v1728, %v1732
          %v1735 = vlaneseq
          %v1736 = vshrl.u32 %v1735, 7
          %v1737 = vsub.s32 1, %v1736
          %v1738 = vrot.slane %v1726, %v1737
          %v1739 = vadd.f32 %v1733, %v1738
          %v1740 = vadd.f32 %v1734, %v1738
          %v1741 = vmax.f32 %v1739, 0.0
          %v1742 = vmax.f32 %v1740, 0.0
          %1743 = vst [vmem:[#allocation2] sm:$0xff] %v1741
          %1744 = vst [vmem:[#allocation2 + $0x8] sm:$0xff] %v1742
          %v1745 = vld [vmem:[#allocation3] sm:$0xff]
          %v1746 = vmul.f32 %v1745, %v1732
          %v1747 = vadd.f32 %v1746, %v1738
          %v1748 = vmax.f32 %v1747, 0.0
          %1749 = vst [vmem:[#allocation3] sm:$0xff] %v1748
        $region120: #{tpu_custom_call.1} parent=91 // pred_fallthru
          _
        %p1750 = scmp.eq.s32.totalorder %s42, 2
        // Predicated region
        $region121: #{tpu_custom_call.1} parent=91 // pred_check
          %p1751 = pneg %p1750
        $region122: #{tpu_custom_call.1} parent=91 // pred_check_branch
          %1753 = sbr.rel (%p1751) target = $region124
        $region123: #{tpu_custom_call.1} parent=91 // pred_region
          %v1754 = vld [vmem:[#allocation2] sm:$0xff]
          %v1755 = vld [vmem:[#allocation2 + $0x8] sm:$0xff]
          %v1756 = vsub.f32 0.0, %v1754
          %v1757 = vsub.f32 0.0, %v1755
          %v1758 = vmul.f32 %v1756, 1.442695
          %v1759 = vpow.pop %v1758
          %v1760 = vmul.f32 %v1757, 1.442695
          %v1761 = vpow.pop %v1760
          %v1762 = vadd.f32 %v1759, 1.0
          %v1763 = vadd.f32 %v1761, 1.0
          %v1764 = vrcp.pop %v1762
          %v1765 = vrcp.pop %v1763
          %1766 = vst [vmem:[#allocation12] sm:$0xff] %v1764
          %1767 = vst [vmem:[#allocation12 + $0x8] sm:$0xff] %v1765
          %v1768 = vld [vmem:[#allocation3] sm:$0xff]
          %v1769 = vsub.f32 0.0, %v1768
          %v1770 = vmul.f32 %v1769, 1.442695
          %v1771 = vpow.pop %v1770
          %v1772 = vadd.f32 %v1771, 1.0
          %v1773 = vrcp.pop %v1772
          %1774 = vst [vmem:[#allocation13] sm:$0xff] %v1773
        $region124: #{tpu_custom_call.1} parent=91 // pred_fallthru
          _
        // Predicated region
        $region125: #{tpu_custom_call.1} parent=91 // pred_check
          %p1775 = pneg %p488
        $region126: #{tpu_custom_call.1} parent=91 // pred_check_branch
          %1777 = sbr.rel (%p1775) target = $region128
        $region127: #{tpu_custom_call.1} parent=91 // pred_region
          %s1779 = ssub.s32 256, 256
          %1780 = vsyncadd [#allocation6], %s1779
          %s1781 = sshll.u32 [#allocation12], 4
          %s1782 = int_to_ptr.vmem [resolvable:$true] %s1781
          %1787 = dma.vmem_to_hbm [thread:$0]  %s1782, 256, %s18, [#allocation6], 128, 128, 8
        $region128: #{tpu_custom_call.1} parent=91 // pred_fallthru
          _
        // Predicated region
        $region129: #{tpu_custom_call.1} parent=91 // pred_check
          %p1788 = pneg %p509
        $region130: #{tpu_custom_call.1} parent=91 // pred_check_branch
          %1790 = sbr.rel (%p1788) target = $region132
        $region131: #{tpu_custom_call.1} parent=91 // pred_region
          %s1792 = ssub.s32 128, 128
          %1793 = vsyncadd [#allocation14], %s1792
          %s1795 = sshll.u32 [#allocation13], 4
          %s1796 = int_to_ptr.vmem [resolvable:$true] %s1795
          %1798 = dma.vmem_to_hbm [thread:$0]  %s1796, 128, %s19, [#allocation14]
        $region132: #{tpu_custom_call.1} parent=91 // pred_fallthru
          _
        // Predicated region
        $region133: #{tpu_custom_call.1} parent=91 // pred_check
          %p1799 = pneg %p488
        $region134: #{tpu_custom_call.1} parent=91 // pred_check_branch
          %1801 = sbr.rel (%p1799) target = $region136
        $region135: #{tpu_custom_call.1} parent=91 // pred_region
          %1802 = dma.done [#allocation6], 256
        $region136: #{tpu_custom_call.1} parent=91 // pred_fallthru
          _
        // Predicated region
        $region137: #{tpu_custom_call.1} parent=91 // pred_check
          %p1803 = pneg %p509
        $region138: #{tpu_custom_call.1} parent=91 // pred_check_branch
          %1805 = sbr.rel (%p1803) target = $region140
        $region139: #{tpu_custom_call.1} parent=91 // pred_region
          %1806 = dma.done [#allocation14], 128
        $region140: #{tpu_custom_call.1} parent=91 // pred_fallthru
          _
      $region92: #{tpu_custom_call.1} parent=5 // pred_fallthru
        _
      %p1807 = scmp.le.s32.totalorder 2, %s37
      // Predicated region
      $region141: #{tpu_custom_call.1} parent=5 // pred_check
        %p1808 = pneg %p1807
      $region142: #{tpu_custom_call.1} parent=5 // pred_check_branch
        %1810 = sbr.rel (%p1808) target = $region144
      $region143: #{tpu_custom_call.1} parent=5 // pred_region
        %s1811 = ssub.s32 %s37, 2
      $region144: #{tpu_custom_call.1} parent=5 // pred_fallthru
        _
    $region6: #{tpu_custom_call.1} parent=1 // loop_footer
      %s41 = sadd.s32 1, %s37
    $region7: #{tpu_custom_call.1} parent=1 // loop_footer_branch
      %36 = sbr.rel target = $region3
    $region8: #{tpu_custom_call.1} parent=1 // loop_exit
      _
    %1812 = vsyncpa [#allocation5], 1
    %s1813 = scalar_lea.sflag [#allocation5], 1
    %1814 = vsyncpa %s1813, 1
    %1815 = vsyncpa [#allocation8], 1
    %s1816 = scalar_lea.sflag [#allocation8], 1
    %1817 = vsyncpa %s1816, 1
    %1818 = vsyncpa [#allocation11], 1
    %s1819 = scalar_lea.sflag [#allocation11], 1
    %1820 = vsyncpa %s1819, 1
    %1821 = vsyncpa [#allocation6], 1
    %s1822 = scalar_lea.sflag [#allocation6], 1
    %1823 = vsyncpa %s1822, 1
    %1824 = vsyncpa [#allocation14], 1

</llo_original>
